<compile_context>
chip_gen: v5e
topology: v5e:2x2
jax: 0.10.0
libtpu: 0.0.40
codegen_flags: <defaults>
</compile_context>

<pallas_src>
import functools

import jax
import jax.numpy as jnp
import numpy as np
from jax import lax
from jax.experimental import pallas as pl
from jax.experimental.pallas import tpu as pltpu


def review_encoder_kernel(x_ref, idv_ref, wslab_ref, bconv_ref,
                          w1_ref, b1_ref, a1_ref, out_ref, *, valid_len):
    # x_ref:     (B_blk, L_pad, D)  zero-padded embedded reviews (matmul dtype)
    # idv_ref:   (B_blk, E)         id embeddings                (matmul dtype)
    # wslab_ref: (ktaps*D, K)       conv weight as im2col slab (tap-major rows)
    # bconv_ref: (1, K)   f32       conv bias
    # w1_ref:    (E, A)             l1 weight (transposed)       (matmul dtype)
    # b1_ref:    (1, A)   f32       l1 bias
    # a1_ref:    (A, K)             attention matrix A1          (matmul dtype)
    # out_ref:   (B_blk, K) f32
    # valid_len: static int, number of real (unpadded) sequence positions.
    B_blk, L_pad, D = x_ref.shape
    KD, K = wslab_ref.shape
    ktaps = KD // D
    L = L_pad - (ktaps - 1)            # L_eff, padded to a multiple of 8

    x = x_ref[...]                                            # (B_blk, L_pad, D)

    # ---- Conv1d ('same' padding, odd kernel) + ReLU as ONE MXU matmul over
    #      the whole batch block: im2col slab (B_blk*L, ktaps*D) @ (ktaps*D, K).
    slab = jnp.concatenate([x[:, j:j + L, :] for j in range(ktaps)], axis=-1)
    slab = slab.reshape(B_blk * L, KD)     # free merge: L is a multiple of 8
    acc = jnp.dot(slab, wslab_ref[...], preferred_element_type=jnp.float32)
    c = jnp.maximum(acc + bconv_ref[...], 0.0)                # (B_blk*L, K) f32
    c = c.reshape(B_blk, L, K)
    # nn.Dropout(p=1.0): identity in eval/inference mode.

    # ---- Attention query: relu(id_vec @ W1^T + b1) @ A1  -> (B_blk, 1, K)
    qw = jnp.maximum(
        jnp.dot(idv_ref[...], w1_ref[...], preferred_element_type=jnp.float32)
        + b1_ref[...], 0.0)                                   # (B_blk, A) f32
    gq = jnp.dot(qw.astype(a1_ref.dtype), a1_ref[...],
                 preferred_element_type=jnp.float32)[:, None, :]

    # ---- Scores + masked softmax over the sequence axis (batched MXU matmul).
    g = jnp.einsum('bok,blk->bol', gq, c,
                   preferred_element_type=jnp.float32)        # (B_blk, 1, L)
    if valid_len < L:                   # mask padded sequence positions
        pos = lax.broadcasted_iota(jnp.int32, (1, 1, L), 2)
        g = jnp.where(pos < valid_len, g, jnp.float32(-1e30))
    g_max = jnp.max(g, axis=-1, keepdims=True)
    p = jnp.exp(g - g_max)
    inv = pl.reciprocal(jnp.sum(p, axis=-1, keepdims=True), approx=True)
    alph = p * inv                                            # (B_blk, 1, L)

    # ---- d[b, k] = sum_t alph[b, t] * c[b, t, k]   (batched MXU matmul)
    d = jnp.einsum('bol,blk->bok', alph, c,
                   preferred_element_type=jnp.float32)        # (B_blk, 1, K)
    out_ref[...] = d[:, 0, :].astype(out_ref.dtype)


def prepare_params(params):
    """One-time re-layout of PyTorch-style parameters for the kernel."""
    w_conv = params["conv_w"]                  # (K, D, ktaps)  PyTorch Conv1d
    K, D, ktaps = w_conv.shape
    # w_slab[j*D + d, o] == W_pt[o, d, j]  (tap-major rows, matches in-kernel concat)
    w_slab = jnp.transpose(w_conv, (2, 1, 0)).reshape(ktaps * D, K)
    return {
        "word_weights": params["word_weights"],                       # (V, D)
        "id_embedding": params["id_embedding"],                       # (N_id, E)
        "conv_w_slab": w_slab,                                        # (ktaps*D, K)
        "conv_b": params["conv_b"].reshape(1, K).astype(jnp.float32),
        "l1_w_t": jnp.transpose(params["l1_w"]),                      # (E, A)
        "l1_b": params["l1_b"].reshape(1, -1).astype(jnp.float32),
        "A1": params["A1"],                                           # (A, K)
    }


@functools.partial(jax.jit, static_argnames=("matmul_dtype", "b_blk"))
def review_encoder_forward(review, ids, prep, *, matmul_dtype=jnp.bfloat16,
                           b_blk=None):
    ww = prep["word_weights"]                  # (V, D)
    id_emb = prep["id_embedding"]              # (N_id, E)
    w_slab = prep["conv_w_slab"]               # (ktaps*D, K)
    w1_t = prep["l1_w_t"]                      # (E, A)

    V, D = ww.shape
    KD, K = w_slab.shape
    ktaps = KD // D
    pad = (ktaps - 1) // 2
    E, A = w1_t.shape
    B, L = review.shape

    # Pad the sequence axis up to a sublane multiple so the in-kernel
    # (B_blk, L, KD) -> (B_blk*L, KD) merge is layout-free; padded positions
    # are masked out of the softmax inside the kernel.
    L_eff = ((L + 7) // 8) * 8
    L_pad = L_eff + 2 * pad

    # Batch block: target ~256 rows for the conv matmul M-dim, multiple of 8
    # sublanes.  (Working set is tiny, so VMEM is not a constraint on any
    # generation; >128 rows mostly amortizes per-step overhead.)
    if b_blk is None:
        b_blk = max(1, -(-256 // L_eff))
    b_blk = max(8, ((int(b_blk) + 7) // 8) * 8)
    B_pad = -(-B // b_blk) * b_blk
    n_blocks = B_pad // b_blk

    # --- glue in plain JAX: embedding gathers + seq zero-padding -------------
    # TODO(synk): fuse the word-embedding gather into the kernel (scalar-prefetch
    # token ids + DMA row gather from HBM) to remove this x_pad HBM round-trip;
    # per-row DMA gather only pays off for large word_vec_dim, so it stays in XLA.
    review_p = jnp.pad(review, ((0, B_pad - B), (0, 0)))      # pad rows use token 0
    ids_p = jnp.pad(ids, (0, B_pad - B))
    x = jnp.take(ww, review_p, axis=0)                        # (B_pad, L, D)
    x_pad = jnp.pad(
        x, ((0, 0), (pad, pad + (L_eff - L)), (0, 0))).astype(matmul_dtype)
    idv = jnp.take(id_emb, ids_p, axis=0).astype(matmul_dtype)  # (B_pad, E)

    kernel = functools.partial(review_encoder_kernel, valid_len=L)

    out = pl.pallas_call(
        kernel,
        out_shape=jax.ShapeDtypeStruct((B_pad, K), jnp.float32),
        grid_spec=pltpu.PrefetchScalarGridSpec(
            num_scalar_prefetch=0,
            grid=(n_blocks,),
            in_specs=[
                pl.BlockSpec((b_blk, L_pad, D), lambda b: (b, 0, 0)),
                pl.BlockSpec((b_blk, E), lambda b: (b, 0)),
                pl.BlockSpec((KD, K), lambda b: (0, 0)),
                pl.BlockSpec((1, K), lambda b: (0, 0)),
                pl.BlockSpec((E, A), lambda b: (0, 0)),
                pl.BlockSpec((1, A), lambda b: (0, 0)),
                pl.BlockSpec((A, K), lambda b: (0, 0)),
            ],
            out_specs=pl.BlockSpec((b_blk, K), lambda b: (b, 0)),
        ),
        compiler_params=pltpu.CompilerParams(
            dimension_semantics=("parallel",)),
    )(x_pad, idv,
      w_slab.astype(matmul_dtype),
      prep["conv_b"],
      w1_t.astype(matmul_dtype),
      prep["l1_b"],
      prep["A1"].astype(matmul_dtype))

    # PyTorch returns (B, conv_kernel_num, 1); trailing-axis reshape is free.
    return out[:B, :, None]


def reference_forward(review, ids, params):
    """Pure-JAX reference mirroring the PyTorch forward (eval mode)."""
    pad = (params["conv_w"].shape[2] - 1) // 2
    x = jnp.take(params["word_weights"], review, axis=0)       # (B, L, D)
    xt = jnp.transpose(x, (0, 2, 1))                           # (B, D, L)
    c = jax.lax.conv_general_dilated(
        xt, params["conv_w"], window_strides=(1,), padding=[(pad, pad)],
        dimension_numbers=("NCH", "OIH", "NCH"))
    c = jax.nn.relu(c + params["conv_b"][None, :, None])       # (B, K, L)
    idv = jnp.take(params["id_embedding"], ids, axis=0)        # (B, E)
    qw = jax.nn.relu(idv @ params["l1_w"].T + params["l1_b"])  # (B, A)
    g = (qw @ params["A1"])[:, None, :]                        # (B, 1, K)
    g = jnp.einsum("bik,bkl->bil", g, c)                       # (B, 1, L)
    alph = jax.nn.softmax(g, axis=2)
    d = jnp.einsum("bkl,bil->bki", c, alph)                    # (B, K, 1)
    return d


if __name__ == "__main__":
    # Small shapes consistent with the module.  Exercises: multi-block grid
    # with batch padding (B=20 -> B_blk=16 -> padded B=32, grid=(2,)) and a
    # review length that is NOT a sublane multiple (L=12 -> padded to 16 with
    # in-kernel softmax masking).
    B, L = 20, 12              # batch, review length
    V, D = 50, 32              # vocab, word_vec_dim
    K, ktaps = 32, 3           # conv_kernel_num, conv_length
    N_id, E = 10, 16           # id_matrix_len, id_embedding_dim
    A = 16                     # atten_vec_dim

    key = jax.random.PRNGKey(0)
    ks = jax.random.split(key, 9)

    params = {
        "word_weights": jax.random.normal(ks[0], (V, D), jnp.float32),
        "id_embedding": jax.random.normal(ks[1], (N_id, E), jnp.float32),
        "conv_w": jax.random.normal(ks[2], (K, D, ktaps), jnp.float32)
                  * (1.0 / np.sqrt(D * ktaps)),
        "conv_b": jax.random.normal(ks[3], (K,), jnp.float32) * 0.1,
        "l1_w": jax.random.normal(ks[4], (A, E), jnp.float32) * (1.0 / np.sqrt(E)),
        "l1_b": jax.random.normal(ks[5], (A,), jnp.float32) * 0.1,
        "A1": jax.random.normal(ks[6], (A, K), jnp.float32),
    }

    review = jax.random.randint(ks[7], (B, L), 0, V, dtype=jnp.int32)
    ids = jax.random.randint(ks[8], (B,), 0, N_id, dtype=jnp.int32)

    prep = prepare_params(params)
    d_ref = jax.block_until_ready(reference_forward(review, ids, params))

    # f32 matmul path: correctness check (rtol relaxed slightly for the
    # approximate EUP reciprocal used on the softmax denominator).
    d32 = jax.block_until_ready(
        review_encoder_forward(review, ids, prep, matmul_dtype=jnp.float32))
    assert d32.shape == (B, K, 1), d32.shape
    np.testing.assert_allclose(np.asarray(d32), np.asarray(d_ref),
                               rtol=2e-2, atol=1e-3)

    # bf16 matmul-input path (recommended on v6e/v7x; f32 accumulation).
    # bf16 conv inputs perturb the softmax logits, so only a sanity check here.
    dbf = jax.block_until_ready(review_encoder_forward(review, ids, prep))
    assert dbf.shape == (B, K, 1), dbf.shape
    assert bool(jnp.all(jnp.isfinite(dbf)))

    print("KERNEL_OK")
</pallas_src>

<mosaic_0001>
module attributes {stable_mosaic.version = 11 : i64} {
  func.func @review_encoder_kernel(%arg0: i32, %arg1: memref<16x18x32xf32, #tpu.memory_space<vmem>>, %arg2: memref<16x16xf32, #tpu.memory_space<vmem>>, %arg3: memref<96x32xf32, #tpu.memory_space<vmem>>, %arg4: memref<1x32xf32, #tpu.memory_space<vmem>>, %arg5: memref<16x16xf32, #tpu.memory_space<vmem>>, %arg6: memref<1x16xf32, #tpu.memory_space<vmem>>, %arg7: memref<16x32xf32, #tpu.memory_space<vmem>>, %arg8: memref<16x32xf32, #tpu.memory_space<vmem>>) attributes {dimension_semantics = [#tpu.dimension_semantics<parallel>], iteration_bounds = array<i64: 2>, scalar_prefetch = 0 : i64, scratch_operands = 0 : i64, tpu.core_type = #tpu.core_type<tc>, window_params = [{transform_indices = @transform_0, window_bounds = array<i64: 16, 18, 32>}, {transform_indices = @transform_1, window_bounds = array<i64: 16, 16>}, {pipeline_mode = #tpu.pipeline_mode<synchronous>, transform_indices = @transform_2, window_bounds = array<i64: 96, 32>}, {pipeline_mode = #tpu.pipeline_mode<synchronous>, transform_indices = @transform_3, window_bounds = array<i64: 1, 32>}, {pipeline_mode = #tpu.pipeline_mode<synchronous>, transform_indices = @transform_4, window_bounds = array<i64: 16, 16>}, {pipeline_mode = #tpu.pipeline_mode<synchronous>, transform_indices = @transform_5, window_bounds = array<i64: 1, 16>}, {pipeline_mode = #tpu.pipeline_mode<synchronous>, transform_indices = @transform_6, window_bounds = array<i64: 16, 32>}, {transform_indices = @transform_7, window_bounds = array<i64: 16, 32>}]} {
    %c0 = arith.constant 0 : index
    %c0_0 = arith.constant 0 : index
    %c0_1 = arith.constant 0 : index
    %0 = vector.load %arg1[%c0, %c0_0, %c0_1] : memref<16x18x32xf32, #tpu.memory_space<vmem>>, vector<16x18x32xf32>
    %1 = vector.extract_strided_slice %0 {offsets = [0, 0, 0], sizes = [16, 16, 32], strides = [1, 1, 1]} : vector<16x18x32xf32> to vector<16x16x32xf32>
    %2 = vector.extract_strided_slice %0 {offsets = [0, 1, 0], sizes = [16, 16, 32], strides = [1, 1, 1]} : vector<16x18x32xf32> to vector<16x16x32xf32>
    %3 = vector.extract_strided_slice %0 {offsets = [0, 2, 0], sizes = [16, 16, 32], strides = [1, 1, 1]} : vector<16x18x32xf32> to vector<16x16x32xf32>
    %4 = tpu.concatenate %1, %2, %3 in 2 : vector<16x16x32xf32>, vector<16x16x32xf32>, vector<16x16x32xf32> -> vector<16x16x96xf32>
    %5 = vector.shape_cast %4 : vector<16x16x96xf32> to vector<256x96xf32>
    %c0_2 = arith.constant 0 : index
    %c0_3 = arith.constant 0 : index
    %6 = vector.load %arg3[%c0_2, %c0_3] : memref<96x32xf32, #tpu.memory_space<vmem>>, vector<96x32xf32>
    %cst = arith.constant dense<0.000000e+00> : vector<256x32xf32>
    %7 = tpu.matmul %5, %6, %cst {dimension_numbers = #tpu.dot_dimension_numbers<[1], [0], [0], [1], [0, 0, 1, 1], [], []>} : vector<256x96xf32>, vector<96x32xf32>, vector<256x32xf32> -> vector<256x32xf32>
    %c0_4 = arith.constant 0 : index
    %c0_5 = arith.constant 0 : index
    %8 = vector.load %arg4[%c0_4, %c0_5] : memref<1x32xf32, #tpu.memory_space<vmem>>, vector<1x32xf32>
    %9 = vector.broadcast %8 : vector<1x32xf32> to vector<256x32xf32>
    %10 = arith.addf %7, %9 : vector<256x32xf32>
    %cst_6 = arith.constant 0.000000e+00 : f32
    %11 = vector.broadcast %cst_6 : f32 to vector<256x32xf32>
    %12 = arith.maximumf %10, %11 : vector<256x32xf32>
    %13 = vector.shape_cast %12 : vector<256x32xf32> to vector<16x16x32xf32>
    %c0_7 = arith.constant 0 : index
    %c0_8 = arith.constant 0 : index
    %14 = vector.load %arg2[%c0_7, %c0_8] : memref<16x16xf32, #tpu.memory_space<vmem>>, vector<16x16xf32>
    %c0_9 = arith.constant 0 : index
    %c0_10 = arith.constant 0 : index
    %15 = vector.load %arg5[%c0_9, %c0_10] : memref<16x16xf32, #tpu.memory_space<vmem>>, vector<16x16xf32>
    %cst_11 = arith.constant dense<0.000000e+00> : vector<16x16xf32>
    %16 = tpu.matmul %14, %15, %cst_11 {dimension_numbers = #tpu.dot_dimension_numbers<[1], [0], [0], [1], [0, 0, 1, 1], [], []>} : vector<16x16xf32>, vector<16x16xf32>, vector<16x16xf32> -> vector<16x16xf32>
    %c0_12 = arith.constant 0 : index
    %c0_13 = arith.constant 0 : index
    %17 = vector.load %arg6[%c0_12, %c0_13] : memref<1x16xf32, #tpu.memory_space<vmem>>, vector<1x16xf32>
    %18 = vector.broadcast %17 : vector<1x16xf32> to vector<16x16xf32>
    %19 = arith.addf %16, %18 : vector<16x16xf32>
    %cst_14 = arith.constant 0.000000e+00 : f32
    %20 = vector.broadcast %cst_14 : f32 to vector<16x16xf32>
    %21 = arith.maximumf %19, %20 : vector<16x16xf32>
    %c0_15 = arith.constant 0 : index
    %c0_16 = arith.constant 0 : index
    %22 = vector.load %arg7[%c0_15, %c0_16] : memref<16x32xf32, #tpu.memory_space<vmem>>, vector<16x32xf32>
    %cst_17 = arith.constant dense<0.000000e+00> : vector<16x32xf32>
    %23 = tpu.matmul %21, %22, %cst_17 {dimension_numbers = #tpu.dot_dimension_numbers<[1], [0], [0], [1], [0, 0, 1, 1], [], []>} : vector<16x16xf32>, vector<16x32xf32>, vector<16x32xf32> -> vector<16x32xf32>
    %24 = vector.shape_cast %23 : vector<16x32xf32> to vector<16x1x32xf32>
    "tpu.trace_start"() <{level = 10 : i32, message = "bok,blk->bol"}> : () -> ()
    %cst_18 = arith.constant dense<0.000000e+00> : vector<16x1x16xf32>
    %25 = tpu.matmul %24, %13, %cst_18 {dimension_numbers = #tpu.dot_dimension_numbers<[2], [2], [1], [1], [0, 0, 0, 1, 1, 1], [0], [0]>} : vector<16x1x32xf32>, vector<16x16x32xf32>, vector<16x1x16xf32> -> vector<16x1x16xf32>
    "tpu.trace_stop"() : () -> ()
    %26 = tpu.iota {dimensions = array<i32: 2>} : vector<1x1x16xi32>
    %c12_i32 = arith.constant 12 : i32
    %27 = vector.broadcast %c12_i32 : i32 to vector<1x1x16xi32>
    %28 = arith.cmpi slt, %26, %27 : vector<1x1x16xi32>
    %cst_19 = arith.constant -1.000000e+30 : f32
    %29 = vector.shape_cast %28 : vector<1x1x16xi1> to vector<1x1x16xi1>
    %30 = vector.broadcast %29 : vector<1x1x16xi1> to vector<16x1x16xi1>
    %31 = vector.broadcast %cst_19 : f32 to vector<16x1x16xf32>
    %32 = arith.select %30, %25, %31 : vector<16x1x16xi1>, vector<16x1x16xf32>
    %cst_20 = arith.constant dense<0xFF800000> : vector<16x1xf32>
    %33 = vector.multi_reduction <maximumf>, %32, %cst_20 [2] : vector<16x1x16xf32> to vector<16x1xf32>
    %34 = vector.shape_cast %33 : vector<16x1xf32> to vector<16x1x1xf32>
    %35 = vector.broadcast %34 : vector<16x1x1xf32> to vector<16x1x16xf32>
    %36 = arith.subf %32, %35 : vector<16x1x16xf32>
    %37 = math.exp %36 : vector<16x1x16xf32>
    %cst_21 = arith.constant dense<0.000000e+00> : vector<16x1xf32>
    %38 = vector.multi_reduction <add>, %37, %cst_21 [2] : vector<16x1x16xf32> to vector<16x1xf32>
    %39 = vector.shape_cast %38 : vector<16x1xf32> to vector<16x1x1xf32>
    %40 = tpu.reciprocal %39 {approx = true} : vector<16x1x1xf32> -> vector<16x1x1xf32>
    %41 = vector.broadcast %40 : vector<16x1x1xf32> to vector<16x1x16xf32>
    %42 = arith.mulf %37, %41 : vector<16x1x16xf32>
    "tpu.trace_start"() <{level = 10 : i32, message = "bol,blk->bok"}> : () -> ()
    %cst_22 = arith.constant dense<0.000000e+00> : vector<16x1x32xf32>
    %43 = tpu.matmul %42, %13, %cst_22 {dimension_numbers = #tpu.dot_dimension_numbers<[2], [1], [1], [2], [0, 0, 0, 1, 1, 2], [0], [0]>} : vector<16x1x16xf32>, vector<16x16x32xf32>, vector<16x1x32xf32> -> vector<16x1x32xf32>
    "tpu.trace_stop"() : () -> ()
    %44 = vector.shape_cast %43 : vector<16x1x32xf32> to vector<16x32xf32>
    %c0_23 = arith.constant 0 : index
    %c0_24 = arith.constant 0 : index
    %45 = vector.load %arg8[%c0_23, %c0_24] : memref<16x32xf32, #tpu.memory_space<vmem>>, vector<16x32xf32>
    tpu.vector_store %arg8[%c0_23, %c0_24], %44 {strides = array<i32>} : memref<16x32xf32, #tpu.memory_space<vmem>>, vector<16x32xf32>,
    return
  }
  func.func @transform_0(%arg0: i32) -> (i32, i32, i32) {
    %c0_i32 = arith.constant 0 : i32
    %c0_i32_0 = arith.constant 0 : i32
    %c0_i32_1 = arith.constant 0 : i32
    return %arg0, %c0_i32, %c0_i32_0 : i32, i32, i32
  }
  func.func @transform_1(%arg0: i32) -> (i32, i32) {
    %c0_i32 = arith.constant 0 : i32
    %c0_i32_0 = arith.constant 0 : i32
    return %arg0, %c0_i32 : i32, i32
  }
  func.func @transform_2(%arg0: i32) -> (i32, i32) {
    %c0_i32 = arith.constant 0 : i32
    %c0_i32_0 = arith.constant 0 : i32
    %c0_i32_1 = arith.constant 0 : i32
    return %c0_i32, %c0_i32_0 : i32, i32
  }
  func.func @transform_3(%arg0: i32) -> (i32, i32) {
    %c0_i32 = arith.constant 0 : i32
    %c0_i32_0 = arith.constant 0 : i32
    %c0_i32_1 = arith.constant 0 : i32
    return %c0_i32, %c0_i32_0 : i32, i32
  }
  func.func @transform_4(%arg0: i32) -> (i32, i32) {
    %c0_i32 = arith.constant 0 : i32
    %c0_i32_0 = arith.constant 0 : i32
    %c0_i32_1 = arith.constant 0 : i32
    return %c0_i32, %c0_i32_0 : i32, i32
  }
  func.func @transform_5(%arg0: i32) -> (i32, i32) {
    %c0_i32 = arith.constant 0 : i32
    %c0_i32_0 = arith.constant 0 : i32
    %c0_i32_1 = arith.constant 0 : i32
    return %c0_i32, %c0_i32_0 : i32, i32
  }
  func.func @transform_6(%arg0: i32) -> (i32, i32) {
    %c0_i32 = arith.constant 0 : i32
    %c0_i32_0 = arith.constant 0 : i32
    %c0_i32_1 = arith.constant 0 : i32
    return %c0_i32, %c0_i32_0 : i32, i32
  }
  func.func @transform_7(%arg0: i32) -> (i32, i32) {
    %c0_i32 = arith.constant 0 : i32
    %c0_i32_0 = arith.constant 0 : i32
    return %arg0, %c0_i32 : i32, i32
  }
}

</mosaic_0001>

<llo_original>
// kernel: review_encoder_forward.1
$region0: #{review_encoder_forward.1}
  #allocation0 [shape = 'u32[]', space=smem, size = 0x4, offset = 0x4, fixed_abs, tag = 'smem constant byte address 0x4 - core index']
  #allocation1 [shape = 'u32[72,128]{1,0:T(1,128)}', space=vmem, size = 0x9000, scoped, tag = 'internal scratch']
  %s0 = inlined_call_operand.vmem [shape: f32[32,18,32], index: 0, kind: input, shape index: {}]
  %s1 = inlined_call_operand.vmem [shape: f32[32,16], index: 1, kind: input, shape index: {}]
  %s2 = inlined_call_operand.vmem [shape: f32[96,32], index: 2, kind: input, shape index: {}]
  %s3 = inlined_call_operand.vmem [shape: f32[1,32], index: 3, kind: input, shape index: {}]
  %s4 = inlined_call_operand.vmem [shape: f32[16,16], index: 4, kind: input, shape index: {}]
  %s5 = inlined_call_operand.vmem [shape: f32[1,16], index: 5, kind: input, shape index: {}]
  %s6 = inlined_call_operand.vmem [shape: f32[16,32], index: 6, kind: input, shape index: {}]
  %s7 = inlined_call_operand.vmem [shape: f32[32,32], index: 7, kind: output, shape index: {}]
  %s8 = sld [smem:[#allocation0]]
  $region61: #{review_encoder_forward.1} parent=0
    _
  %s10 = ssub.s32 1, %s8
  %s11 = scalar_select 0, %s10, %s8
  loop: start=0, step=1, limit=4
  $region2: #{review_encoder_forward.1} parent=0 // loop_pre_header
    _
  $region3: #{review_encoder_forward.1} parent=0 // loop_header
    %s13 = sphi 0, %s17
    %p14 = scmp.ge.s32.totalorder %s13, 4
    %s23 = sphi 0, %s25
    %s26 = sphi 0, %s23
    %s27 = sphi 0, %s26
    %s43 = sphi 0, %s27
    %s49 = sphi 0, %s51
    %s52 = sphi 0, %s49
    %s53 = sphi 0, %s52
    %s69 = sphi 0, %s53
    %s73 = sphi 0, %s73
    %s75 = sphi 0, %s73
    %s76 = sphi 0, %s75
    %s90 = sphi 0, %s76
    %s94 = sphi 0, %s94
    %s96 = sphi 0, %s94
    %s97 = sphi 0, %s96
    %s111 = sphi 0, %s97
    %s115 = sphi 0, %s115
    %s117 = sphi 0, %s115
    %s118 = sphi 0, %s117
    %s132 = sphi 0, %s118
    %s136 = sphi 0, %s136
    %s138 = sphi 0, %s136
    %s139 = sphi 0, %s138
    %s153 = sphi 0, %s139
    %s157 = sphi 0, %s157
    %s159 = sphi 0, %s157
    %s160 = sphi 0, %s159
    %s174 = sphi 0, %s160
    %s180 = sphi 0, %s182
    %s183 = sphi 0, %s180
    %s184 = sphi 0, %s183
    %s200 = sphi 0, %s184
  $region4: #{review_encoder_forward.1} parent=0 // loop_header_branch
    %16 = sbr.rel (%p14) target = $region8
  $region5: #{review_encoder_forward.1} parent=0 // loop_body
    %s18 = ssub.s32 %s13, 1
    %s19 = ssub.s32 %s13, 2
    %s20 = sadd.s32 %s13, 1
    %s21 = ssub.s32 %s13, %s20
    %p22 = scmp.eq.s32.totalorder %s21, 0
    %s24 = sadd.s32 %s23, 1
    %s25 = scalar_select %p22, %s23, %s24
    %p28 = pneg %p22
    %p29 = scmp.eq.s32.totalorder %s13, 1
    %p30 = por %p28, %p29
    %p31 = scmp.ne.s32.totalorder %s23, %s26
    %p32 = scmp.eq.s32.totalorder %s13, 0
    %p33 = por %p31, %p32
    %p34 = scmp.ne.s32.totalorder %s23, %s26
    %p35 = scmp.eq.s32.totalorder %s18, 1
    %p36 = por %p34, %p35
    %p37 = scmp.ne.s32.totalorder %s26, %s27
    %p38 = scmp.eq.s32.totalorder %s18, 0
    %p39 = por %p37, %p38
    %p40 = scmp.ne.s32.totalorder %s26, %s27
    %p41 = scmp.eq.s32.totalorder %s19, 1
    %p42 = por %p40, %p41
    %p44 = scmp.ne.s32.totalorder %s27, %s43
    %p45 = scmp.eq.s32.totalorder %s19, 0
    %p46 = por %p44, %p45
    %s47 = ssub.s32 %s13, %s20
    %p48 = scmp.eq.s32.totalorder %s47, 0
    %s50 = sadd.s32 %s49, 1
    %s51 = scalar_select %p48, %s49, %s50
    %p54 = pneg %p48
    %p55 = scmp.eq.s32.totalorder %s13, 1
    %p56 = por %p54, %p55
    %p57 = scmp.ne.s32.totalorder %s49, %s52
    %p58 = scmp.eq.s32.totalorder %s13, 0
    %p59 = por %p57, %p58
    %p60 = scmp.ne.s32.totalorder %s49, %s52
    %p61 = scmp.eq.s32.totalorder %s18, 1
    %p62 = por %p60, %p61
    %p63 = scmp.ne.s32.totalorder %s52, %s53
    %p64 = scmp.eq.s32.totalorder %s18, 0
    %p65 = por %p63, %p64
    %p66 = scmp.ne.s32.totalorder %s52, %s53
    %p67 = scmp.eq.s32.totalorder %s19, 1
    %p68 = por %p66, %p67
    %p70 = scmp.ne.s32.totalorder %s53, %s69
    %p71 = scmp.eq.s32.totalorder %s19, 0
    %p72 = por %p70, %p71
    %s74 = sadd.s32 %s73, 1
    %p77 = scmp.eq.s32.totalorder %s13, 1
    %p78 = scmp.ne.s32.totalorder %s73, %s75
    %p79 = scmp.eq.s32.totalorder %s13, 0
    %p80 = por %p78, %p79
    %p81 = scmp.ne.s32.totalorder %s73, %s75
    %p82 = scmp.eq.s32.totalorder %s18, 1
    %p83 = por %p81, %p82
    %p84 = scmp.ne.s32.totalorder %s75, %s76
    %p85 = scmp.eq.s32.totalorder %s18, 0
    %p86 = por %p84, %p85
    %p87 = scmp.ne.s32.totalorder %s75, %s76
    %p88 = scmp.eq.s32.totalorder %s19, 1
    %p89 = por %p87, %p88
    %p91 = scmp.ne.s32.totalorder %s76, %s90
    %p92 = scmp.eq.s32.totalorder %s19, 0
    %p93 = por %p91, %p92
    %s95 = sadd.s32 %s94, 1
    %p98 = scmp.eq.s32.totalorder %s13, 1
    %p99 = scmp.ne.s32.totalorder %s94, %s96
    %p100 = scmp.eq.s32.totalorder %s13, 0
    %p101 = por %p99, %p100
    %p102 = scmp.ne.s32.totalorder %s94, %s96
    %p103 = scmp.eq.s32.totalorder %s18, 1
    %p104 = por %p102, %p103
    %p105 = scmp.ne.s32.totalorder %s96, %s97
    %p106 = scmp.eq.s32.totalorder %s18, 0
    %p107 = por %p105, %p106
    %p108 = scmp.ne.s32.totalorder %s96, %s97
    %p109 = scmp.eq.s32.totalorder %s19, 1
    %p110 = por %p108, %p109
    %p112 = scmp.ne.s32.totalorder %s97, %s111
    %p113 = scmp.eq.s32.totalorder %s19, 0
    %p114 = por %p112, %p113
    %s116 = sadd.s32 %s115, 1
    %p119 = scmp.eq.s32.totalorder %s13, 1
    %p120 = scmp.ne.s32.totalorder %s115, %s117
    %p121 = scmp.eq.s32.totalorder %s13, 0
    %p122 = por %p120, %p121
    %p123 = scmp.ne.s32.totalorder %s115, %s117
    %p124 = scmp.eq.s32.totalorder %s18, 1
    %p125 = por %p123, %p124
    %p126 = scmp.ne.s32.totalorder %s117, %s118
    %p127 = scmp.eq.s32.totalorder %s18, 0
    %p128 = por %p126, %p127
    %p129 = scmp.ne.s32.totalorder %s117, %s118
    %p130 = scmp.eq.s32.totalorder %s19, 1
    %p131 = por %p129, %p130
    %p133 = scmp.ne.s32.totalorder %s118, %s132
    %p134 = scmp.eq.s32.totalorder %s19, 0
    %p135 = por %p133, %p134
    %s137 = sadd.s32 %s136, 1
    %p140 = scmp.eq.s32.totalorder %s13, 1
    %p141 = scmp.ne.s32.totalorder %s136, %s138
    %p142 = scmp.eq.s32.totalorder %s13, 0
    %p143 = por %p141, %p142
    %p144 = scmp.ne.s32.totalorder %s136, %s138
    %p145 = scmp.eq.s32.totalorder %s18, 1
    %p146 = por %p144, %p145
    %p147 = scmp.ne.s32.totalorder %s138, %s139
    %p148 = scmp.eq.s32.totalorder %s18, 0
    %p149 = por %p147, %p148
    %p150 = scmp.ne.s32.totalorder %s138, %s139
    %p151 = scmp.eq.s32.totalorder %s19, 1
    %p152 = por %p150, %p151
    %p154 = scmp.ne.s32.totalorder %s139, %s153
    %p155 = scmp.eq.s32.totalorder %s19, 0
    %p156 = por %p154, %p155
    %s158 = sadd.s32 %s157, 1
    %p161 = scmp.eq.s32.totalorder %s13, 1
    %p162 = scmp.ne.s32.totalorder %s157, %s159
    %p163 = scmp.eq.s32.totalorder %s13, 0
    %p164 = por %p162, %p163
    %p165 = scmp.ne.s32.totalorder %s157, %s159
    %p166 = scmp.eq.s32.totalorder %s18, 1
    %p167 = por %p165, %p166
    %p168 = scmp.ne.s32.totalorder %s159, %s160
    %p169 = scmp.eq.s32.totalorder %s18, 0
    %p170 = por %p168, %p169
    %p171 = scmp.ne.s32.totalorder %s159, %s160
    %p172 = scmp.eq.s32.totalorder %s19, 1
    %p173 = por %p171, %p172
    %p175 = scmp.ne.s32.totalorder %s160, %s174
    %p176 = scmp.eq.s32.totalorder %s19, 0
    %p177 = por %p175, %p176
    %s178 = ssub.s32 %s13, %s20
    %p179 = scmp.eq.s32.totalorder %s178, 0
    %s181 = sadd.s32 %s180, 1
    %s182 = scalar_select %p179, %s180, %s181
    %p185 = pneg %p179
    %p186 = scmp.eq.s32.totalorder %s13, 1
    %p187 = por %p185, %p186
    %p188 = scmp.ne.s32.totalorder %s180, %s183
    %p189 = scmp.eq.s32.totalorder %s13, 0
    %p190 = por %p188, %p189
    %p191 = scmp.ne.s32.totalorder %s180, %s183
    %p192 = scmp.eq.s32.totalorder %s18, 1
    %p193 = por %p191, %p192
    %p194 = scmp.ne.s32.totalorder %s183, %s184
    %p195 = scmp.eq.s32.totalorder %s18, 0
    %p196 = por %p194, %p195
    %p197 = scmp.ne.s32.totalorder %s183, %s184
    %p198 = scmp.eq.s32.totalorder %s19, 1
    %p199 = por %p197, %p198
    %p201 = scmp.ne.s32.totalorder %s184, %s200
    %p202 = scmp.eq.s32.totalorder %s19, 0
    %p203 = por %p201, %p202
    %p204 = scmp.le.s32.totalorder 1, %s13
    %p205 = scmp.lt.s32.totalorder %s13, 3
    %p206 = pnand %p204, %p205
    %p207 = pneg %p206
    // Predicated region
    $region9: #{review_encoder_forward.1} parent=5 // pred_check
      _
    $region10: #{review_encoder_forward.1} parent=5 // pred_check_branch
      %209 = sbr.rel (%p206) target = $region12
    $region11: #{review_encoder_forward.1} parent=5 // pred_region
      %s210 = ssub.s32 %s13, 1
      // Predicated region
      $region13: #{review_encoder_forward.1} parent=11 // pred_check
        %p211 = pneg %p86
      $region14: #{review_encoder_forward.1} parent=11 // pred_check_branch
        %213 = sbr.rel (%p211) target = $region16
      $region15: #{review_encoder_forward.1} parent=11 // pred_region
        _
      $region16: #{review_encoder_forward.1} parent=11 // pred_fallthru
        _
      // Predicated region
      $region17: #{review_encoder_forward.1} parent=11 // pred_check
        %p214 = pneg %p107
      $region18: #{review_encoder_forward.1} parent=11 // pred_check_branch
        %216 = sbr.rel (%p214) target = $region20
      $region19: #{review_encoder_forward.1} parent=11 // pred_region
        _
      $region20: #{review_encoder_forward.1} parent=11 // pred_fallthru
        _
      // Predicated region
      $region21: #{review_encoder_forward.1} parent=11 // pred_check
        %p217 = pneg %p128
      $region22: #{review_encoder_forward.1} parent=11 // pred_check_branch
        %219 = sbr.rel (%p217) target = $region24
      $region23: #{review_encoder_forward.1} parent=11 // pred_region
        _
      $region24: #{review_encoder_forward.1} parent=11 // pred_fallthru
        _
      // Predicated region
      $region25: #{review_encoder_forward.1} parent=11 // pred_check
        %p220 = pneg %p149
      $region26: #{review_encoder_forward.1} parent=11 // pred_check_branch
        %222 = sbr.rel (%p220) target = $region28
      $region27: #{review_encoder_forward.1} parent=11 // pred_region
        _
      $region28: #{review_encoder_forward.1} parent=11 // pred_fallthru
        _
      // Predicated region
      $region29: #{review_encoder_forward.1} parent=11 // pred_check
        %p223 = pneg %p170
      $region30: #{review_encoder_forward.1} parent=11 // pred_check_branch
        %225 = sbr.rel (%p223) target = $region32
      $region31: #{review_encoder_forward.1} parent=11 // pred_region
        _
      $region32: #{review_encoder_forward.1} parent=11 // pred_fallthru
        _
    $region12: #{review_encoder_forward.1} parent=5 // pred_fallthru
      _
    %p226 = scmp.lt.s32.totalorder %s13, 2
    // Predicated region
    $region33: #{review_encoder_forward.1} parent=5 // pred_check
      %p227 = pneg %p226
    $region34: #{review_encoder_forward.1} parent=5 // pred_check_branch
      %229 = sbr.rel (%p227) target = $region36
    $region35: #{review_encoder_forward.1} parent=5 // pred_region
      // Predicated region
      $region37: #{review_encoder_forward.1} parent=35 // pred_check
        %p230 = pneg %p33
      $region38: #{review_encoder_forward.1} parent=35 // pred_check_branch
        %232 = sbr.rel (%p230) target = $region40
      $region39: #{review_encoder_forward.1} parent=35 // pred_region
        %s233 = smul.u32 16, %s13
        %p234 = scmp.lt.s32.totalorder %s233, 31
        %s235 = scalar_select %p234, %s233, 31
        %s236 = smul.addr %s235, 3
        %s237 = smul.addr %s236, 8
        %s238 = scalar_lea.vmem %s0, %s237
        %s239 = smul.u32 16, %s13
      $region40: #{review_encoder_forward.1} parent=35 // pred_fallthru
        _
      // Predicated region
      $region41: #{review_encoder_forward.1} parent=35 // pred_check
        %p240 = pneg %p59
      $region42: #{review_encoder_forward.1} parent=35 // pred_check_branch
        %242 = sbr.rel (%p240) target = $region44
      $region43: #{review_encoder_forward.1} parent=35 // pred_region
        %s243 = smul.u32 2, %s13
        %p244 = scmp.lt.s32.totalorder %s243, 3
        %s245 = scalar_select %p244, %s243, 3
        %s246 = smul.addr %s245, 8
        %s247 = scalar_lea.vmem %s1, %s246
        %s248 = smul.u32 2, %s13
      $region44: #{review_encoder_forward.1} parent=35 // pred_fallthru
        _
    $region36: #{review_encoder_forward.1} parent=5 // pred_fallthru
      _
    %p249 = scmp.le.s32.totalorder 1, %s13
    %p250 = scmp.lt.s32.totalorder %s13, 3
    %p251 = pnand %p249, %p250
    %p252 = pneg %p251
    // Predicated region
    $region45: #{review_encoder_forward.1} parent=5 // pred_check
      _
    $region46: #{review_encoder_forward.1} parent=5 // pred_check_branch
      %254 = sbr.rel (%p251) target = $region48
    $region47: #{review_encoder_forward.1} parent=5 // pred_region
      %s255 = ssub.s32 %s13, 1
      %s256 = smul.u32 16, %s18
      %p257 = scmp.lt.s32.totalorder %s256, 31
      %s258 = scalar_select %p257, %s256, 31
      %s259 = smul.addr %s258, 3
      %s260 = smul.addr %s259, 8
      %s261 = scalar_lea.vmem %s0, %s260
      %p262 = pneg %p39
      %p263 = pneg %p36
      %s264 = smul.u32 2, %s18
      %p265 = scmp.lt.s32.totalorder %s264, 3
      %s266 = scalar_select %p265, %s264, 3
      %s267 = smul.addr %s266, 8
      %s268 = scalar_lea.vmem %s1, %s267
      %p269 = pneg %p65
      %p270 = pneg %p62
      %p271 = pneg %p86
      %p272 = pneg %p83
      %p273 = pneg %p107
      %p274 = pneg %p104
      %p275 = pneg %p128
      %p276 = pneg %p125
      %p277 = pneg %p149
      %p278 = pneg %p146
      %p279 = pneg %p170
      %p280 = pneg %p167
      %p281 = pneg %p196
      %p282 = pneg %p193
      %s283 = smul.u32 2, %s18
      %p284 = scmp.lt.s32.totalorder %s283, 3
      %s285 = scalar_select %p284, %s283, 3
      %s286 = smul.addr %s285, 8
      %s287 = scalar_lea.vmem %s7, %s286
      %s288 = smul.u32 16, %s18
      %p289 = scmp.lt.s32.totalorder %s288, 31
      %s290 = scalar_select %p289, %s288, 31
      %s291 = smul.addr %s290, 3
      %s292 = smul.addr %s291, 8
      %s293 = scalar_lea.vmem %s0, %s292
      %s294 = smul.u32 16, %s18
      %s295 = smul.u32 2, %s18
      %p296 = scmp.lt.s32.totalorder %s295, 3
      %s297 = scalar_select %p296, %s295, 3
      %s298 = smul.addr %s297, 8
      %s299 = scalar_lea.vmem %s1, %s298
      %s300 = smul.u32 2, %s18
      %s301 = smul.u32 2, %s18
      %p302 = scmp.lt.s32.totalorder %s301, 3
      %s303 = scalar_select %p302, %s301, 3
      %s304 = smul.addr %s303, 8
      %s305 = scalar_lea.vmem %s7, %s304
      %s306 = smul.u32 2, %s18
      %v307 = vld [vmem:[%s293] sm:$0xff]
      %v308 = vld [vmem:[%s293 + $0x8] sm:$0xff]
      %v309 = vld [vmem:[%s293 + $0x10] sm:$0x3]
      %v310 = vld [vmem:[%s293 + $0x18] sm:$0xff]
      %v311 = vld [vmem:[%s293 + $0x20] sm:$0xff]
      %v312 = vld [vmem:[%s293 + $0x28] sm:$0x3]
      %v313 = vld [vmem:[%s293 + $0x30] sm:$0xff]
      %v314 = vld [vmem:[%s293 + $0x38] sm:$0xff]
      %v315 = vld [vmem:[%s293 + $0x40] sm:$0x3]
      %v316 = vld [vmem:[%s293 + $0x48] sm:$0xff]
      %v317 = vld [vmem:[%s293 + $0x50] sm:$0xff]
      %v318 = vld [vmem:[%s293 + $0x58] sm:$0x3]
      %v319 = vld [vmem:[%s293 + $0x60] sm:$0xff]
      %v320 = vld [vmem:[%s293 + $0x68] sm:$0xff]
      %v321 = vld [vmem:[%s293 + $0x70] sm:$0x3]
      %v322 = vld [vmem:[%s293 + $0x78] sm:$0xff]
      %v323 = vld [vmem:[%s293 + $0x80] sm:$0xff]
      %v324 = vld [vmem:[%s293 + $0x88] sm:$0x3]
      %v325 = vld [vmem:[%s293 + $0x90] sm:$0xff]
      %v326 = vld [vmem:[%s293 + $0x98] sm:$0xff]
      %v327 = vld [vmem:[%s293 + $0xa0] sm:$0x3]
      %v328 = vld [vmem:[%s293 + $0xa8] sm:$0xff]
      %v329 = vld [vmem:[%s293 + $0xb0] sm:$0xff]
      %v330 = vld [vmem:[%s293 + $0xb8] sm:$0x3]
      %v331 = vld [vmem:[%s293 + $0xc0] sm:$0xff]
      %v332 = vld [vmem:[%s293 + $0xc8] sm:$0xff]
      %v333 = vld [vmem:[%s293 + $0xd0] sm:$0x3]
      %v334 = vld [vmem:[%s293 + $0xd8] sm:$0xff]
      %v335 = vld [vmem:[%s293 + $0xe0] sm:$0xff]
      %v336 = vld [vmem:[%s293 + $0xe8] sm:$0x3]
      %v337 = vld [vmem:[%s293 + $0xf0] sm:$0xff]
      %v338 = vld [vmem:[%s293 + $0xf8] sm:$0xff]
      %v339 = vld [vmem:[%s293 + $0x100] sm:$0x3]
      %v340 = vld [vmem:[%s293 + $0x108] sm:$0xff]
      %v341 = vld [vmem:[%s293 + $0x110] sm:$0xff]
      %v342 = vld [vmem:[%s293 + $0x118] sm:$0x3]
      %v343 = vld [vmem:[%s293 + $0x120] sm:$0xff]
      %v344 = vld [vmem:[%s293 + $0x128] sm:$0xff]
      %v345 = vld [vmem:[%s293 + $0x130] sm:$0x3]
      %v346 = vld [vmem:[%s293 + $0x138] sm:$0xff]
      %v347 = vld [vmem:[%s293 + $0x140] sm:$0xff]
      %v348 = vld [vmem:[%s293 + $0x148] sm:$0x3]
      %v349 = vld [vmem:[%s293 + $0x150] sm:$0xff]
      %v350 = vld [vmem:[%s293 + $0x158] sm:$0xff]
      %v351 = vld [vmem:[%s293 + $0x160] sm:$0x3]
      %v352 = vld [vmem:[%s293 + $0x168] sm:$0xff]
      %v353 = vld [vmem:[%s293 + $0x170] sm:$0xff]
      %v354 = vld [vmem:[%s293 + $0x178] sm:$0x3]
      %vm403 = vcmask 1046528
      %v404 = vrot.slane %v307, 1
      %v405 = vrot.slane %v308, 1
      %v406 = vsel %vm403, %v404, %v405
      %v407 = vrot.slane %v309, 1
      %v408 = vsel %vm403, %v405, %v407
      %v409 = vrot.slane %v310, 1
      %v410 = vrot.slane %v311, 1
      %v411 = vsel %vm403, %v409, %v410
      %v412 = vrot.slane %v312, 1
      %v413 = vsel %vm403, %v410, %v412
      %v414 = vrot.slane %v313, 1
      %v415 = vrot.slane %v314, 1
      %v416 = vsel %vm403, %v414, %v415
      %v417 = vrot.slane %v315, 1
      %v418 = vsel %vm403, %v415, %v417
      %v419 = vrot.slane %v316, 1
      %v420 = vrot.slane %v317, 1
      %v421 = vsel %vm403, %v419, %v420
      %v422 = vrot.slane %v318, 1
      %v423 = vsel %vm403, %v420, %v422
      %v424 = vrot.slane %v319, 1
      %v425 = vrot.slane %v320, 1
      %v426 = vsel %vm403, %v424, %v425
      %v427 = vrot.slane %v321, 1
      %v428 = vsel %vm403, %v425, %v427
      %v429 = vrot.slane %v322, 1
      %v430 = vrot.slane %v323, 1
      %v431 = vsel %vm403, %v429, %v430
      %v432 = vrot.slane %v324, 1
      %v433 = vsel %vm403, %v430, %v432
      %v434 = vrot.slane %v325, 1
      %v435 = vrot.slane %v326, 1
      %v436 = vsel %vm403, %v434, %v435
      %v437 = vrot.slane %v327, 1
      %v438 = vsel %vm403, %v435, %v437
      %v439 = vrot.slane %v328, 1
      %v440 = vrot.slane %v329, 1
      %v441 = vsel %vm403, %v439, %v440
      %v442 = vrot.slane %v330, 1
      %v443 = vsel %vm403, %v440, %v442
      %v444 = vrot.slane %v331, 1
      %v445 = vrot.slane %v332, 1
      %v446 = vsel %vm403, %v444, %v445
      %v447 = vrot.slane %v333, 1
      %v448 = vsel %vm403, %v445, %v447
      %v449 = vrot.slane %v334, 1
      %v450 = vrot.slane %v335, 1
      %v451 = vsel %vm403, %v449, %v450
      %v452 = vrot.slane %v336, 1
      %v453 = vsel %vm403, %v450, %v452
      %v454 = vrot.slane %v337, 1
      %v455 = vrot.slane %v338, 1
      %v456 = vsel %vm403, %v454, %v455
      %v457 = vrot.slane %v339, 1
      %v458 = vsel %vm403, %v455, %v457
      %v459 = vrot.slane %v340, 1
      %v460 = vrot.slane %v341, 1
      %v461 = vsel %vm403, %v459, %v460
      %v462 = vrot.slane %v342, 1
      %v463 = vsel %vm403, %v460, %v462
      %v464 = vrot.slane %v343, 1
      %v465 = vrot.slane %v344, 1
      %v466 = vsel %vm403, %v464, %v465
      %v467 = vrot.slane %v345, 1
      %v468 = vsel %vm403, %v465, %v467
      %v469 = vrot.slane %v346, 1
      %v470 = vrot.slane %v347, 1
      %v471 = vsel %vm403, %v469, %v470
      %v472 = vrot.slane %v348, 1
      %v473 = vsel %vm403, %v470, %v472
      %v474 = vrot.slane %v349, 1
      %v475 = vrot.slane %v350, 1
      %v476 = vsel %vm403, %v474, %v475
      %v477 = vrot.slane %v351, 1
      %v478 = vsel %vm403, %v475, %v477
      %v479 = vrot.slane %v352, 1
      %v480 = vrot.slane %v353, 1
      %v481 = vsel %vm403, %v479, %v480
      %v482 = vrot.slane %v354, 1
      %v483 = vsel %vm403, %v480, %v482
      %484 = vrot.lane.b32.xlu0 %v406, 32
      %v485 = vpop.permute.xlu0 %484
      %486 = vrot.lane.b32.xlu0 %v408, 32
      %v487 = vpop.permute.xlu0 %486
      %488 = vrot.lane.b32.xlu0 %v411, 32
      %v489 = vpop.permute.xlu0 %488
      %490 = vrot.lane.b32.xlu0 %v413, 32
      %v491 = vpop.permute.xlu0 %490
      %492 = vrot.lane.b32.xlu0 %v416, 32
      %v493 = vpop.permute.xlu0 %492
      %494 = vrot.lane.b32.xlu0 %v418, 32
      %v495 = vpop.permute.xlu0 %494
      %496 = vrot.lane.b32.xlu0 %v421, 32
      %v497 = vpop.permute.xlu0 %496
      %498 = vrot.lane.b32.xlu0 %v423, 32
      %v499 = vpop.permute.xlu0 %498
      %500 = vrot.lane.b32.xlu0 %v426, 32
      %v501 = vpop.permute.xlu0 %500
      %502 = vrot.lane.b32.xlu0 %v428, 32
      %v503 = vpop.permute.xlu0 %502
      %504 = vrot.lane.b32.xlu0 %v431, 32
      %v505 = vpop.permute.xlu0 %504
      %506 = vrot.lane.b32.xlu0 %v433, 32
      %v507 = vpop.permute.xlu0 %506
      %508 = vrot.lane.b32.xlu0 %v436, 32
      %v509 = vpop.permute.xlu0 %508
      %510 = vrot.lane.b32.xlu0 %v438, 32
      %v511 = vpop.permute.xlu0 %510
      %512 = vrot.lane.b32.xlu0 %v441, 32
      %v513 = vpop.permute.xlu0 %512
      %514 = vrot.lane.b32.xlu0 %v443, 32
      %v515 = vpop.permute.xlu0 %514
      %516 = vrot.lane.b32.xlu0 %v446, 32
      %v517 = vpop.permute.xlu0 %516
      %518 = vrot.lane.b32.xlu0 %v448, 32
      %v519 = vpop.permute.xlu0 %518
      %520 = vrot.lane.b32.xlu0 %v451, 32
      %v521 = vpop.permute.xlu0 %520
      %522 = vrot.lane.b32.xlu0 %v453, 32
      %v523 = vpop.permute.xlu0 %522
      %524 = vrot.lane.b32.xlu0 %v456, 32
      %v525 = vpop.permute.xlu0 %524
      %526 = vrot.lane.b32.xlu0 %v458, 32
      %v527 = vpop.permute.xlu0 %526
      %528 = vrot.lane.b32.xlu0 %v461, 32
      %v529 = vpop.permute.xlu0 %528
      %530 = vrot.lane.b32.xlu0 %v463, 32
      %v531 = vpop.permute.xlu0 %530
      %532 = vrot.lane.b32.xlu0 %v466, 32
      %v533 = vpop.permute.xlu0 %532
      %534 = vrot.lane.b32.xlu0 %v468, 32
      %v535 = vpop.permute.xlu0 %534
      %536 = vrot.lane.b32.xlu0 %v471, 32
      %v537 = vpop.permute.xlu0 %536
      %538 = vrot.lane.b32.xlu0 %v473, 32
      %v539 = vpop.permute.xlu0 %538
      %540 = vrot.lane.b32.xlu0 %v476, 32
      %v541 = vpop.permute.xlu0 %540
      %542 = vrot.lane.b32.xlu0 %v478, 32
      %v543 = vpop.permute.xlu0 %542
      %544 = vrot.lane.b32.xlu0 %v481, 32
      %v545 = vpop.permute.xlu0 %544
      %546 = vrot.lane.b32.xlu0 %v483, 32
      %v547 = vpop.permute.xlu0 %546
      %vm580 = vcmask 1045504
      %v581 = vrot.slane %v307, 2
      %v582 = vrot.slane %v308, 2
      %v583 = vsel %vm580, %v581, %v582
      %v584 = vrot.slane %v309, 2
      %v585 = vsel %vm580, %v582, %v584
      %v586 = vrot.slane %v310, 2
      %v587 = vrot.slane %v311, 2
      %v588 = vsel %vm580, %v586, %v587
      %v589 = vrot.slane %v312, 2
      %v590 = vsel %vm580, %v587, %v589
      %v591 = vrot.slane %v313, 2
      %v592 = vrot.slane %v314, 2
      %v593 = vsel %vm580, %v591, %v592
      %v594 = vrot.slane %v315, 2
      %v595 = vsel %vm580, %v592, %v594
      %v596 = vrot.slane %v316, 2
      %v597 = vrot.slane %v317, 2
      %v598 = vsel %vm580, %v596, %v597
      %v599 = vrot.slane %v318, 2
      %v600 = vsel %vm580, %v597, %v599
      %v601 = vrot.slane %v319, 2
      %v602 = vrot.slane %v320, 2
      %v603 = vsel %vm580, %v601, %v602
      %v604 = vrot.slane %v321, 2
      %v605 = vsel %vm580, %v602, %v604
      %v606 = vrot.slane %v322, 2
      %v607 = vrot.slane %v323, 2
      %v608 = vsel %vm580, %v606, %v607
      %v609 = vrot.slane %v324, 2
      %v610 = vsel %vm580, %v607, %v609
      %v611 = vrot.slane %v325, 2
      %v612 = vrot.slane %v326, 2
      %v613 = vsel %vm580, %v611, %v612
      %v614 = vrot.slane %v327, 2
      %v615 = vsel %vm580, %v612, %v614
      %v616 = vrot.slane %v328, 2
      %v617 = vrot.slane %v329, 2
      %v618 = vsel %vm580, %v616, %v617
      %v619 = vrot.slane %v330, 2
      %v620 = vsel %vm580, %v617, %v619
      %v621 = vrot.slane %v331, 2
      %v622 = vrot.slane %v332, 2
      %v623 = vsel %vm580, %v621, %v622
      %v624 = vrot.slane %v333, 2
      %v625 = vsel %vm580, %v622, %v624
      %v626 = vrot.slane %v334, 2
      %v627 = vrot.slane %v335, 2
      %v628 = vsel %vm580, %v626, %v627
      %v629 = vrot.slane %v336, 2
      %v630 = vsel %vm580, %v627, %v629
      %v631 = vrot.slane %v337, 2
      %v632 = vrot.slane %v338, 2
      %v633 = vsel %vm580, %v631, %v632
      %v634 = vrot.slane %v339, 2
      %v635 = vsel %vm580, %v632, %v634
      %v636 = vrot.slane %v340, 2
      %v637 = vrot.slane %v341, 2
      %v638 = vsel %vm580, %v636, %v637
      %v639 = vrot.slane %v342, 2
      %v640 = vsel %vm580, %v637, %v639
      %v641 = vrot.slane %v343, 2
      %v642 = vrot.slane %v344, 2
      %v643 = vsel %vm580, %v641, %v642
      %v644 = vrot.slane %v345, 2
      %v645 = vsel %vm580, %v642, %v644
      %v646 = vrot.slane %v346, 2
      %v647 = vrot.slane %v347, 2
      %v648 = vsel %vm580, %v646, %v647
      %v649 = vrot.slane %v348, 2
      %v650 = vsel %vm580, %v647, %v649
      %v651 = vrot.slane %v349, 2
      %v652 = vrot.slane %v350, 2
      %v653 = vsel %vm580, %v651, %v652
      %v654 = vrot.slane %v351, 2
      %v655 = vsel %vm580, %v652, %v654
      %v656 = vrot.slane %v352, 2
      %v657 = vrot.slane %v353, 2
      %v658 = vsel %vm580, %v656, %v657
      %v659 = vrot.slane %v354, 2
      %v660 = vsel %vm580, %v657, %v659
      %661 = vrot.lane.b32.xlu0 %v583, 64
      %v662 = vpop.permute.xlu0 %661
      %663 = vrot.lane.b32.xlu0 %v585, 64
      %v664 = vpop.permute.xlu0 %663
      %665 = vrot.lane.b32.xlu0 %v588, 64
      %v666 = vpop.permute.xlu0 %665
      %667 = vrot.lane.b32.xlu0 %v590, 64
      %v668 = vpop.permute.xlu0 %667
      %669 = vrot.lane.b32.xlu0 %v593, 64
      %v670 = vpop.permute.xlu0 %669
      %671 = vrot.lane.b32.xlu0 %v595, 64
      %v672 = vpop.permute.xlu0 %671
      %673 = vrot.lane.b32.xlu0 %v598, 64
      %v674 = vpop.permute.xlu0 %673
      %675 = vrot.lane.b32.xlu0 %v600, 64
      %v676 = vpop.permute.xlu0 %675
      %677 = vrot.lane.b32.xlu0 %v603, 64
      %v678 = vpop.permute.xlu0 %677
      %679 = vrot.lane.b32.xlu0 %v605, 64
      %v680 = vpop.permute.xlu0 %679
      %681 = vrot.lane.b32.xlu0 %v608, 64
      %v682 = vpop.permute.xlu0 %681
      %683 = vrot.lane.b32.xlu0 %v610, 64
      %v684 = vpop.permute.xlu0 %683
      %685 = vrot.lane.b32.xlu0 %v613, 64
      %v686 = vpop.permute.xlu0 %685
      %687 = vrot.lane.b32.xlu0 %v615, 64
      %v688 = vpop.permute.xlu0 %687
      %689 = vrot.lane.b32.xlu0 %v618, 64
      %v690 = vpop.permute.xlu0 %689
      %691 = vrot.lane.b32.xlu0 %v620, 64
      %v692 = vpop.permute.xlu0 %691
      %693 = vrot.lane.b32.xlu0 %v623, 64
      %v694 = vpop.permute.xlu0 %693
      %695 = vrot.lane.b32.xlu0 %v625, 64
      %v696 = vpop.permute.xlu0 %695
      %697 = vrot.lane.b32.xlu0 %v628, 64
      %v698 = vpop.permute.xlu0 %697
      %699 = vrot.lane.b32.xlu0 %v630, 64
      %v700 = vpop.permute.xlu0 %699
      %701 = vrot.lane.b32.xlu0 %v633, 64
      %v702 = vpop.permute.xlu0 %701
      %703 = vrot.lane.b32.xlu0 %v635, 64
      %v704 = vpop.permute.xlu0 %703
      %705 = vrot.lane.b32.xlu0 %v638, 64
      %v706 = vpop.permute.xlu0 %705
      %707 = vrot.lane.b32.xlu0 %v640, 64
      %v708 = vpop.permute.xlu0 %707
      %709 = vrot.lane.b32.xlu0 %v643, 64
      %v710 = vpop.permute.xlu0 %709
      %711 = vrot.lane.b32.xlu0 %v645, 64
      %v712 = vpop.permute.xlu0 %711
      %713 = vrot.lane.b32.xlu0 %v648, 64
      %v714 = vpop.permute.xlu0 %713
      %715 = vrot.lane.b32.xlu0 %v650, 64
      %v716 = vpop.permute.xlu0 %715
      %717 = vrot.lane.b32.xlu0 %v653, 64
      %v718 = vpop.permute.xlu0 %717
      %719 = vrot.lane.b32.xlu0 %v655, 64
      %v720 = vpop.permute.xlu0 %719
      %721 = vrot.lane.b32.xlu0 %v658, 64
      %v722 = vpop.permute.xlu0 %721
      %723 = vrot.lane.b32.xlu0 %v660, 64
      %v724 = vpop.permute.xlu0 %723
      %vm757 = vcmask 261120
      %v758 = vsel %vm757, %v307, %v485
      %v759 = vsel %vm757, %v308, %v487
      %v760 = vsel %vm757, %v310, %v489
      %v761 = vsel %vm757, %v311, %v491
      %v762 = vsel %vm757, %v313, %v493
      %v763 = vsel %vm757, %v314, %v495
      %v764 = vsel %vm757, %v316, %v497
      %v765 = vsel %vm757, %v317, %v499
      %v766 = vsel %vm757, %v319, %v501
      %v767 = vsel %vm757, %v320, %v503
      %v768 = vsel %vm757, %v322, %v505
      %v769 = vsel %vm757, %v323, %v507
      %v770 = vsel %vm757, %v325, %v509
      %v771 = vsel %vm757, %v326, %v511
      %v772 = vsel %vm757, %v328, %v513
      %v773 = vsel %vm757, %v329, %v515
      %v774 = vsel %vm757, %v331, %v517
      %v775 = vsel %vm757, %v332, %v519
      %v776 = vsel %vm757, %v334, %v521
      %v777 = vsel %vm757, %v335, %v523
      %v778 = vsel %vm757, %v337, %v525
      %v779 = vsel %vm757, %v338, %v527
      %v780 = vsel %vm757, %v340, %v529
      %v781 = vsel %vm757, %v341, %v531
      %v782 = vsel %vm757, %v343, %v533
      %v783 = vsel %vm757, %v344, %v535
      %v784 = vsel %vm757, %v346, %v537
      %v785 = vsel %vm757, %v347, %v539
      %v786 = vsel %vm757, %v349, %v541
      %v787 = vsel %vm757, %v350, %v543
      %v788 = vsel %vm757, %v352, %v545
      %v789 = vsel %vm757, %v353, %v547
      %vm790 = vcmask 523264
      %v791 = vsel %vm790, %v758, %v662
      %v792 = vsel %vm790, %v759, %v664
      %v793 = vsel %vm790, %v760, %v666
      %v794 = vsel %vm790, %v761, %v668
      %v795 = vsel %vm790, %v762, %v670
      %v796 = vsel %vm790, %v763, %v672
      %v797 = vsel %vm790, %v764, %v674
      %v798 = vsel %vm790, %v765, %v676
      %v799 = vsel %vm790, %v766, %v678
      %v800 = vsel %vm790, %v767, %v680
      %v801 = vsel %vm790, %v768, %v682
      %v802 = vsel %vm790, %v769, %v684
      %v803 = vsel %vm790, %v770, %v686
      %v804 = vsel %vm790, %v771, %v688
      %v805 = vsel %vm790, %v772, %v690
      %v806 = vsel %vm790, %v773, %v692
      %v807 = vsel %vm790, %v774, %v694
      %v808 = vsel %vm790, %v775, %v696
      %v809 = vsel %vm790, %v776, %v698
      %v810 = vsel %vm790, %v777, %v700
      %v811 = vsel %vm790, %v778, %v702
      %v812 = vsel %vm790, %v779, %v704
      %v813 = vsel %vm790, %v780, %v706
      %v814 = vsel %vm790, %v781, %v708
      %v815 = vsel %vm790, %v782, %v710
      %v816 = vsel %vm790, %v783, %v712
      %v817 = vsel %vm790, %v784, %v714
      %v818 = vsel %vm790, %v785, %v716
      %v819 = vsel %vm790, %v786, %v718
      %v820 = vsel %vm790, %v787, %v720
      %v821 = vsel %vm790, %v788, %v722
      %v822 = vsel %vm790, %v789, %v724
      %v823 = vld [vmem:[%s2] sm:$0xff]
      %v824 = vld [vmem:[%s2 + $0x8] sm:$0xff]
      %v825 = vld [vmem:[%s2 + $0x10] sm:$0xff]
      %v826 = vld [vmem:[%s2 + $0x18] sm:$0xff]
      %v827 = vld [vmem:[%s2 + $0x20] sm:$0xff]
      %v828 = vld [vmem:[%s2 + $0x28] sm:$0xff]
      %v829 = vld [vmem:[%s2 + $0x30] sm:$0xff]
      %v830 = vld [vmem:[%s2 + $0x38] sm:$0xff]
      %v831 = vld [vmem:[%s2 + $0x40] sm:$0xff]
      %v832 = vld [vmem:[%s2 + $0x48] sm:$0xff]
      %v833 = vld [vmem:[%s2 + $0x50] sm:$0xff]
      %v834 = vld [vmem:[%s2 + $0x58] sm:$0xff]
      %v835 = vld [vmem:[%s3] sm:$0x1]
      %v837 = vperm.slane %v835, 0
      %vm839 = vcmask 785408
      %v841 = vsel %vm839, %v791, 0
      %v844 = vsel %vm839, %v792, 0
      %v847 = vsel %vm839, %v793, 0
      %v850 = vsel %vm839, %v794, 0
      %v853 = vsel %vm839, %v795, 0
      %v856 = vsel %vm839, %v796, 0
      %v859 = vsel %vm839, %v797, 0
      %v862 = vsel %vm839, %v798, 0
      %v865 = vsel %vm839, %v799, 0
      %v868 = vsel %vm839, %v800, 0
      %v871 = vsel %vm839, %v801, 0
      %v874 = vsel %vm839, %v802, 0
      %v877 = vsel %vm839, %v803, 0
      %v880 = vsel %vm839, %v804, 0
      %v883 = vsel %vm839, %v805, 0
      %v886 = vsel %vm839, %v806, 0
      %v889 = vsel %vm839, %v807, 0
      %v892 = vsel %vm839, %v808, 0
      %v895 = vsel %vm839, %v809, 0
      %v898 = vsel %vm839, %v810, 0
      %v901 = vsel %vm839, %v811, 0
      %v904 = vsel %vm839, %v812, 0
      %v907 = vsel %vm839, %v813, 0
      %v910 = vsel %vm839, %v814, 0
      %v913 = vsel %vm839, %v815, 0
      %v916 = vsel %vm839, %v816, 0
      %v919 = vsel %vm839, %v817, 0
      %v922 = vsel %vm839, %v818, 0
      %v925 = vsel %vm839, %v819, 0
      %v928 = vsel %vm839, %v820, 0
      %v931 = vsel %vm839, %v821, 0
      %v934 = vsel %vm839, %v822, 0
      %936 = vmatpush.msra.mxu0 0.0
      %937 = vmatpush.msra.mxu0 0.0
      %938 = vmatpush.msra.mxu0 0.0
      %939 = vmatpush.msra.mxu0 0.0
      %940 = vmatpush.msra.mxu0 %v834
      %941 = vmatpush.msra.mxu0 %v833
      %942 = vmatpush.msra.mxu0 %v832
      %943 = vmatpush.msra.mxu0 %v831
      %944 = vmatpush.msra.mxu0 %v830
      %945 = vmatpush.msra.mxu0 %v829
      %946 = vmatpush.msra.mxu0 %v828
      %947 = vmatpush.msra.mxu0 %v827
      %948 = vmatpush.msra.mxu0 %v826
      %949 = vmatpush.msra.mxu0 %v825
      %950 = vmatpush.msra.mxu0 %v824
      %951 = vmatpush.msra.mxu0 %v823
      %952 = vmatmul.f32.gmra.mxu0 %v841
      %v953 = vpop.f32.mrf.mxu0
      %v954 = vadd.f32 %v837, %v953
      %955 = vmatmul.f32.gmra.mxu0 %v844
      %v956 = vpop.f32.mrf.mxu0
      %v957 = vadd.f32 %v837, %v956
      %958 = vmatmul.f32.gmra.mxu0 %v847
      %v959 = vpop.f32.mrf.mxu0
      %v960 = vadd.f32 %v837, %v959
      %961 = vmatmul.f32.gmra.mxu0 %v850
      %v962 = vpop.f32.mrf.mxu0
      %v963 = vadd.f32 %v837, %v962
      %964 = vmatmul.f32.gmra.mxu0 %v853
      %v965 = vpop.f32.mrf.mxu0
      %v966 = vadd.f32 %v837, %v965
      %967 = vmatmul.f32.gmra.mxu0 %v856
      %v968 = vpop.f32.mrf.mxu0
      %v969 = vadd.f32 %v837, %v968
      %970 = vmatmul.f32.gmra.mxu0 %v859
      %v971 = vpop.f32.mrf.mxu0
      %v972 = vadd.f32 %v837, %v971
      %973 = vmatmul.f32.gmra.mxu0 %v862
      %v974 = vpop.f32.mrf.mxu0
      %v975 = vadd.f32 %v837, %v974
      %976 = vmatmul.f32.gmra.mxu0 %v865
      %v977 = vpop.f32.mrf.mxu0
      %v978 = vadd.f32 %v837, %v977
      %979 = vmatmul.f32.gmra.mxu0 %v868
      %v980 = vpop.f32.mrf.mxu0
      %v981 = vadd.f32 %v837, %v980
      %982 = vmatmul.f32.gmra.mxu0 %v871
      %v983 = vpop.f32.mrf.mxu0
      %v984 = vadd.f32 %v837, %v983
      %985 = vmatmul.f32.gmra.mxu0 %v874
      %v986 = vpop.f32.mrf.mxu0
      %v987 = vadd.f32 %v837, %v986
      %988 = vmatmul.f32.gmra.mxu0 %v877
      %v989 = vpop.f32.mrf.mxu0
      %v990 = vadd.f32 %v837, %v989
      %991 = vmatmul.f32.gmra.mxu0 %v880
      %v992 = vpop.f32.mrf.mxu0
      %v993 = vadd.f32 %v837, %v992
      %994 = vmatmul.f32.gmra.mxu0 %v883
      %v995 = vpop.f32.mrf.mxu0
      %v996 = vadd.f32 %v837, %v995
      %997 = vmatmul.f32.gmra.mxu0 %v886
      %v998 = vpop.f32.mrf.mxu0
      %v999 = vadd.f32 %v837, %v998
      %1000 = vmatmul.f32.gmra.mxu0 %v889
      %v1001 = vpop.f32.mrf.mxu0
      %v1002 = vadd.f32 %v837, %v1001
      %1003 = vmatmul.f32.gmra.mxu0 %v892
      %v1004 = vpop.f32.mrf.mxu0
      %v1005 = vadd.f32 %v837, %v1004
      %1006 = vmatmul.f32.gmra.mxu0 %v895
      %v1007 = vpop.f32.mrf.mxu0
      %v1008 = vadd.f32 %v837, %v1007
      %1009 = vmatmul.f32.gmra.mxu0 %v898
      %v1010 = vpop.f32.mrf.mxu0
      %v1011 = vadd.f32 %v837, %v1010
      %1012 = vmatmul.f32.gmra.mxu0 %v901
      %v1013 = vpop.f32.mrf.mxu0
      %v1014 = vadd.f32 %v837, %v1013
      %1015 = vmatmul.f32.gmra.mxu0 %v904
      %v1016 = vpop.f32.mrf.mxu0
      %v1017 = vadd.f32 %v837, %v1016
      %1018 = vmatmul.f32.gmra.mxu0 %v907
      %v1019 = vpop.f32.mrf.mxu0
      %v1020 = vadd.f32 %v837, %v1019
      %1021 = vmatmul.f32.gmra.mxu0 %v910
      %v1022 = vpop.f32.mrf.mxu0
      %v1023 = vadd.f32 %v837, %v1022
      %1024 = vmatmul.f32.gmra.mxu0 %v913
      %v1025 = vpop.f32.mrf.mxu0
      %v1026 = vadd.f32 %v837, %v1025
      %1027 = vmatmul.f32.gmra.mxu0 %v916
      %v1028 = vpop.f32.mrf.mxu0
      %v1029 = vadd.f32 %v837, %v1028
      %1030 = vmatmul.f32.gmra.mxu0 %v919
      %v1031 = vpop.f32.mrf.mxu0
      %v1032 = vadd.f32 %v837, %v1031
      %1033 = vmatmul.f32.gmra.mxu0 %v922
      %v1034 = vpop.f32.mrf.mxu0
      %v1035 = vadd.f32 %v837, %v1034
      %1036 = vmatmul.f32.gmra.mxu0 %v925
      %v1037 = vpop.f32.mrf.mxu0
      %v1038 = vadd.f32 %v837, %v1037
      %1039 = vmatmul.f32.gmra.mxu0 %v928
      %v1040 = vpop.f32.mrf.mxu0
      %v1041 = vadd.f32 %v837, %v1040
      %1042 = vmatmul.f32.gmra.mxu0 %v931
      %v1043 = vpop.f32.mrf.mxu0
      %v1044 = vadd.f32 %v837, %v1043
      %1045 = vmatmul.f32.gmra.mxu0 %v934
      %v1046 = vpop.f32.mrf.mxu0
      %v1047 = vadd.f32 %v837, %v1046
      %1048 = vdwg.mxu0
      %v1049 = vmax.f32 %v954, 0.0
      %v1050 = vmax.f32 %v957, 0.0
      %v1051 = vmax.f32 %v960, 0.0
      %v1052 = vmax.f32 %v963, 0.0
      %v1053 = vmax.f32 %v966, 0.0
      %v1054 = vmax.f32 %v969, 0.0
      %v1055 = vmax.f32 %v972, 0.0
      %v1056 = vmax.f32 %v975, 0.0
      %v1057 = vmax.f32 %v978, 0.0
      %v1058 = vmax.f32 %v981, 0.0
      %v1059 = vmax.f32 %v984, 0.0
      %v1060 = vmax.f32 %v987, 0.0
      %v1061 = vmax.f32 %v990, 0.0
      %v1062 = vmax.f32 %v993, 0.0
      %v1063 = vmax.f32 %v996, 0.0
      %v1064 = vmax.f32 %v999, 0.0
      %v1065 = vmax.f32 %v1002, 0.0
      %v1066 = vmax.f32 %v1005, 0.0
      %v1067 = vmax.f32 %v1008, 0.0
      %v1068 = vmax.f32 %v1011, 0.0
      %v1069 = vmax.f32 %v1014, 0.0
      %v1070 = vmax.f32 %v1017, 0.0
      %v1071 = vmax.f32 %v1020, 0.0
      %v1072 = vmax.f32 %v1023, 0.0
      %v1073 = vmax.f32 %v1026, 0.0
      %v1074 = vmax.f32 %v1029, 0.0
      %v1075 = vmax.f32 %v1032, 0.0
      %v1076 = vmax.f32 %v1035, 0.0
      %v1077 = vmax.f32 %v1038, 0.0
      %v1078 = vmax.f32 %v1041, 0.0
      %v1079 = vmax.f32 %v1044, 0.0
      %v1080 = vmax.f32 %v1047, 0.0
      %v1081 = vld [vmem:[%s299] sm:$0xff]
      %v1082 = vld [vmem:[%s299 + $0x8] sm:$0xff]
      %v1083 = vld [vmem:[%s4] sm:$0xff]
      %v1084 = vld [vmem:[%s4 + $0x8] sm:$0xff]
      %v1085 = vld [vmem:[%s5] sm:$0x1]
      %v1087 = vperm.slane %v1085, 0
      %vm1089 = vcmask 130048
      %v1091 = vsel %vm1089, %v1081, 0
      %v1094 = vsel %vm1089, %v1082, 0
      %1096 = vmatpush.msra.mxu0 0.0
      %1097 = vmatpush.msra.mxu0 0.0
      %1098 = vmatpush.msra.mxu0 0.0
      %1099 = vmatpush.msra.mxu0 0.0
      %1100 = vmatpush.msra.mxu0 0.0
      %1101 = vmatpush.msra.mxu0 0.0
      %1102 = vmatpush.msra.mxu0 0.0
      %1103 = vmatpush.msra.mxu0 0.0
      %1104 = vmatpush.msra.mxu0 0.0
      %1105 = vmatpush.msra.mxu0 0.0
      %1106 = vmatpush.msra.mxu0 0.0
      %1107 = vmatpush.msra.mxu0 0.0
      %1108 = vmatpush.msra.mxu0 0.0
      %1109 = vmatpush.msra.mxu0 0.0
      %1110 = vmatpush.msra.mxu0 %v1084
      %1111 = vmatpush.msra.mxu0 %v1083
      %1112 = vmatmul.f32.gmra.mxu0 %v1091
      %v1113 = vpop.f32.mrf.mxu0
      %v1114 = vadd.f32 %v1087, %v1113
      %1115 = vmatmul.f32.gmra.mxu0 %v1094
      %v1116 = vpop.f32.mrf.mxu0
      %v1117 = vadd.f32 %v1087, %v1116
      %1118 = vdwg.mxu0
      %v1119 = vmax.f32 %v1114, 0.0
      %v1120 = vmax.f32 %v1117, 0.0
      %v1121 = vld [vmem:[%s6] sm:$0xff]
      %v1122 = vld [vmem:[%s6 + $0x8] sm:$0xff]
      %v1124 = vsel %vm1089, %v1119, 0
      %v1127 = vsel %vm1089, %v1120, 0
      %1129 = vmatpush.msra.mxu0 0.0
      %1130 = vmatpush.msra.mxu0 0.0
      %1131 = vmatpush.msra.mxu0 0.0
      %1132 = vmatpush.msra.mxu0 0.0
      %1133 = vmatpush.msra.mxu0 0.0
      %1134 = vmatpush.msra.mxu0 0.0
      %1135 = vmatpush.msra.mxu0 0.0
      %1136 = vmatpush.msra.mxu0 0.0
      %1137 = vmatpush.msra.mxu0 0.0
      %1138 = vmatpush.msra.mxu0 0.0
      %1139 = vmatpush.msra.mxu0 0.0
      %1140 = vmatpush.msra.mxu0 0.0
      %1141 = vmatpush.msra.mxu0 0.0
      %1142 = vmatpush.msra.mxu0 0.0
      %1143 = vmatpush.msra.mxu0 %v1122
      %1144 = vmatpush.msra.mxu0 %v1121
      %1145 = vmatmul.f32.gmra.mxu0 %v1124
      %v1146 = vpop.f32.mrf.mxu0
      %v1147 = vadd.f32 0.0, %v1146
      %1148 = vmatmul.f32.gmra.mxu0 %v1127
      %v1149 = vpop.f32.mrf.mxu0
      %v1150 = vadd.f32 0.0, %v1149
      %1151 = vdwg.mxu0
      %v1154 = vrot.slane %v1147, 1
      %v1155 = vrot.slane %v1147, 2
      %v1156 = vrot.slane %v1147, 3
      %v1157 = vrot.slane %v1147, 4
      %v1158 = vrot.slane %v1147, 5
      %v1159 = vrot.slane %v1147, 6
      %v1160 = vrot.slane %v1147, 7
      %v1161 = vrot.slane %v1150, 1
      %v1162 = vrot.slane %v1150, 2
      %v1163 = vrot.slane %v1150, 3
      %v1164 = vrot.slane %v1150, 4
      %v1165 = vrot.slane %v1150, 5
      %v1166 = vrot.slane %v1150, 6
      %v1167 = vrot.slane %v1150, 7
      %v1168 = vsel %vm757, %v1147, 0
      %v1171 = vsel %vm757, %v1049, 0
      %v1174 = vsel %vm757, %v1050, 0
      %1176 = vmatpush.xpose.msra.mxu0 0.0
      %1177 = vmatpush.xpose.msra.mxu0 0.0
      %1178 = vmatpush.xpose.msra.mxu0 0.0
      %1179 = vmatpush.xpose.msra.mxu0 0.0
      %1180 = vmatpush.xpose.msra.mxu0 0.0
      %1181 = vmatpush.xpose.msra.mxu0 0.0
      %1182 = vmatpush.xpose.msra.mxu0 0.0
      %1183 = vmatpush.xpose.msra.mxu0 0.0
      %1184 = vmatpush.xpose.msra.mxu0 0.0
      %1185 = vmatpush.xpose.msra.mxu0 0.0
      %1186 = vmatpush.xpose.msra.mxu0 0.0
      %1187 = vmatpush.xpose.msra.mxu0 0.0
      %1188 = vmatpush.xpose.msra.mxu0 0.0
      %1189 = vmatpush.xpose.msra.mxu0 0.0
      %1190 = vmatpush.xpose.msra.mxu0 %v1174
      %1191 = vmatpush.xpose.msra.mxu0 %v1171
      %1192 = vmatmul.f32.gmra.mxu0 %v1168
      %v1193 = vpop.f32.mrf.mxu0
      %v1194 = vadd.f32 0.0, %v1193
      %1195 = vdwg.mxu0
      %v1196 = vsel %vm757, %v1154, 0
      %v1199 = vsel %vm757, %v1051, 0
      %v1202 = vsel %vm757, %v1052, 0
      %1204 = vmatpush.xpose.msra.mxu0 0.0
      %1205 = vmatpush.xpose.msra.mxu0 0.0
      %1206 = vmatpush.xpose.msra.mxu0 0.0
      %1207 = vmatpush.xpose.msra.mxu0 0.0
      %1208 = vmatpush.xpose.msra.mxu0 0.0
      %1209 = vmatpush.xpose.msra.mxu0 0.0
      %1210 = vmatpush.xpose.msra.mxu0 0.0
      %1211 = vmatpush.xpose.msra.mxu0 0.0
      %1212 = vmatpush.xpose.msra.mxu0 0.0
      %1213 = vmatpush.xpose.msra.mxu0 0.0
      %1214 = vmatpush.xpose.msra.mxu0 0.0
      %1215 = vmatpush.xpose.msra.mxu0 0.0
      %1216 = vmatpush.xpose.msra.mxu0 0.0
      %1217 = vmatpush.xpose.msra.mxu0 0.0
      %1218 = vmatpush.xpose.msra.mxu0 %v1202
      %1219 = vmatpush.xpose.msra.mxu0 %v1199
      %1220 = vmatmul.f32.gmra.mxu0 %v1196
      %v1221 = vpop.f32.mrf.mxu0
      %v1222 = vadd.f32 0.0, %v1221
      %1223 = vdwg.mxu0
      %v1224 = vsel %vm757, %v1155, 0
      %v1227 = vsel %vm757, %v1053, 0
      %v1230 = vsel %vm757, %v1054, 0
      %1232 = vmatpush.xpose.msra.mxu0 0.0
      %1233 = vmatpush.xpose.msra.mxu0 0.0
      %1234 = vmatpush.xpose.msra.mxu0 0.0
      %1235 = vmatpush.xpose.msra.mxu0 0.0
      %1236 = vmatpush.xpose.msra.mxu0 0.0
      %1237 = vmatpush.xpose.msra.mxu0 0.0
      %1238 = vmatpush.xpose.msra.mxu0 0.0
      %1239 = vmatpush.xpose.msra.mxu0 0.0
      %1240 = vmatpush.xpose.msra.mxu0 0.0
      %1241 = vmatpush.xpose.msra.mxu0 0.0
      %1242 = vmatpush.xpose.msra.mxu0 0.0
      %1243 = vmatpush.xpose.msra.mxu0 0.0
      %1244 = vmatpush.xpose.msra.mxu0 0.0
      %1245 = vmatpush.xpose.msra.mxu0 0.0
      %1246 = vmatpush.xpose.msra.mxu0 %v1230
      %1247 = vmatpush.xpose.msra.mxu0 %v1227
      %1248 = vmatmul.f32.gmra.mxu0 %v1224
      %v1249 = vpop.f32.mrf.mxu0
      %v1250 = vadd.f32 0.0, %v1249
      %1251 = vdwg.mxu0
      %v1252 = vsel %vm757, %v1156, 0
      %v1255 = vsel %vm757, %v1055, 0
      %v1258 = vsel %vm757, %v1056, 0
      %1260 = vmatpush.xpose.msra.mxu0 0.0
      %1261 = vmatpush.xpose.msra.mxu0 0.0
      %1262 = vmatpush.xpose.msra.mxu0 0.0
      %1263 = vmatpush.xpose.msra.mxu0 0.0
      %1264 = vmatpush.xpose.msra.mxu0 0.0
      %1265 = vmatpush.xpose.msra.mxu0 0.0
      %1266 = vmatpush.xpose.msra.mxu0 0.0
      %1267 = vmatpush.xpose.msra.mxu0 0.0
      %1268 = vmatpush.xpose.msra.mxu0 0.0
      %1269 = vmatpush.xpose.msra.mxu0 0.0
      %1270 = vmatpush.xpose.msra.mxu0 0.0
      %1271 = vmatpush.xpose.msra.mxu0 0.0
      %1272 = vmatpush.xpose.msra.mxu0 0.0
      %1273 = vmatpush.xpose.msra.mxu0 0.0
      %1274 = vmatpush.xpose.msra.mxu0 %v1258
      %1275 = vmatpush.xpose.msra.mxu0 %v1255
      %1276 = vmatmul.f32.gmra.mxu0 %v1252
      %v1277 = vpop.f32.mrf.mxu0
      %v1278 = vadd.f32 0.0, %v1277
      %1279 = vdwg.mxu0
      %v1280 = vsel %vm757, %v1157, 0
      %v1283 = vsel %vm757, %v1057, 0
      %v1286 = vsel %vm757, %v1058, 0
      %1288 = vmatpush.xpose.msra.mxu0 0.0
      %1289 = vmatpush.xpose.msra.mxu0 0.0
      %1290 = vmatpush.xpose.msra.mxu0 0.0
      %1291 = vmatpush.xpose.msra.mxu0 0.0
      %1292 = vmatpush.xpose.msra.mxu0 0.0
      %1293 = vmatpush.xpose.msra.mxu0 0.0
      %1294 = vmatpush.xpose.msra.mxu0 0.0
      %1295 = vmatpush.xpose.msra.mxu0 0.0
      %1296 = vmatpush.xpose.msra.mxu0 0.0
      %1297 = vmatpush.xpose.msra.mxu0 0.0
      %1298 = vmatpush.xpose.msra.mxu0 0.0
      %1299 = vmatpush.xpose.msra.mxu0 0.0
      %1300 = vmatpush.xpose.msra.mxu0 0.0
      %1301 = vmatpush.xpose.msra.mxu0 0.0
      %1302 = vmatpush.xpose.msra.mxu0 %v1286
      %1303 = vmatpush.xpose.msra.mxu0 %v1283
      %1304 = vmatmul.f32.gmra.mxu0 %v1280
      %v1305 = vpop.f32.mrf.mxu0
      %v1306 = vadd.f32 0.0, %v1305
      %1307 = vdwg.mxu0
      %v1308 = vsel %vm757, %v1158, 0
      %v1311 = vsel %vm757, %v1059, 0
      %v1314 = vsel %vm757, %v1060, 0
      %1316 = vmatpush.xpose.msra.mxu0 0.0
      %1317 = vmatpush.xpose.msra.mxu0 0.0
      %1318 = vmatpush.xpose.msra.mxu0 0.0
      %1319 = vmatpush.xpose.msra.mxu0 0.0
      %1320 = vmatpush.xpose.msra.mxu0 0.0
      %1321 = vmatpush.xpose.msra.mxu0 0.0
      %1322 = vmatpush.xpose.msra.mxu0 0.0
      %1323 = vmatpush.xpose.msra.mxu0 0.0
      %1324 = vmatpush.xpose.msra.mxu0 0.0
      %1325 = vmatpush.xpose.msra.mxu0 0.0
      %1326 = vmatpush.xpose.msra.mxu0 0.0
      %1327 = vmatpush.xpose.msra.mxu0 0.0
      %1328 = vmatpush.xpose.msra.mxu0 0.0
      %1329 = vmatpush.xpose.msra.mxu0 0.0
      %1330 = vmatpush.xpose.msra.mxu0 %v1314
      %1331 = vmatpush.xpose.msra.mxu0 %v1311
      %1332 = vmatmul.f32.gmra.mxu0 %v1308
      %v1333 = vpop.f32.mrf.mxu0
      %v1334 = vadd.f32 0.0, %v1333
      %1335 = vdwg.mxu0
      %v1336 = vsel %vm757, %v1159, 0
      %v1339 = vsel %vm757, %v1061, 0
      %v1342 = vsel %vm757, %v1062, 0
      %1344 = vmatpush.xpose.msra.mxu0 0.0
      %1345 = vmatpush.xpose.msra.mxu0 0.0
      %1346 = vmatpush.xpose.msra.mxu0 0.0
      %1347 = vmatpush.xpose.msra.mxu0 0.0
      %1348 = vmatpush.xpose.msra.mxu0 0.0
      %1349 = vmatpush.xpose.msra.mxu0 0.0
      %1350 = vmatpush.xpose.msra.mxu0 0.0
      %1351 = vmatpush.xpose.msra.mxu0 0.0
      %1352 = vmatpush.xpose.msra.mxu0 0.0
      %1353 = vmatpush.xpose.msra.mxu0 0.0
      %1354 = vmatpush.xpose.msra.mxu0 0.0
      %1355 = vmatpush.xpose.msra.mxu0 0.0
      %1356 = vmatpush.xpose.msra.mxu0 0.0
      %1357 = vmatpush.xpose.msra.mxu0 0.0
      %1358 = vmatpush.xpose.msra.mxu0 %v1342
      %1359 = vmatpush.xpose.msra.mxu0 %v1339
      %1360 = vmatmul.f32.gmra.mxu0 %v1336
      %v1361 = vpop.f32.mrf.mxu0
      %v1362 = vadd.f32 0.0, %v1361
      %1363 = vdwg.mxu0
      %v1364 = vsel %vm757, %v1160, 0
      %v1367 = vsel %vm757, %v1063, 0
      %v1370 = vsel %vm757, %v1064, 0
      %1372 = vmatpush.xpose.msra.mxu0 0.0
      %1373 = vmatpush.xpose.msra.mxu0 0.0
      %1374 = vmatpush.xpose.msra.mxu0 0.0
      %1375 = vmatpush.xpose.msra.mxu0 0.0
      %1376 = vmatpush.xpose.msra.mxu0 0.0
      %1377 = vmatpush.xpose.msra.mxu0 0.0
      %1378 = vmatpush.xpose.msra.mxu0 0.0
      %1379 = vmatpush.xpose.msra.mxu0 0.0
      %1380 = vmatpush.xpose.msra.mxu0 0.0
      %1381 = vmatpush.xpose.msra.mxu0 0.0
      %1382 = vmatpush.xpose.msra.mxu0 0.0
      %1383 = vmatpush.xpose.msra.mxu0 0.0
      %1384 = vmatpush.xpose.msra.mxu0 0.0
      %1385 = vmatpush.xpose.msra.mxu0 0.0
      %1386 = vmatpush.xpose.msra.mxu0 %v1370
      %1387 = vmatpush.xpose.msra.mxu0 %v1367
      %1388 = vmatmul.f32.gmra.mxu0 %v1364
      %v1389 = vpop.f32.mrf.mxu0
      %v1390 = vadd.f32 0.0, %v1389
      %1391 = vdwg.mxu0
      %v1392 = vsel %vm757, %v1150, 0
      %v1395 = vsel %vm757, %v1065, 0
      %v1398 = vsel %vm757, %v1066, 0
      %1400 = vmatpush.xpose.msra.mxu0 0.0
      %1401 = vmatpush.xpose.msra.mxu0 0.0
      %1402 = vmatpush.xpose.msra.mxu0 0.0
      %1403 = vmatpush.xpose.msra.mxu0 0.0
      %1404 = vmatpush.xpose.msra.mxu0 0.0
      %1405 = vmatpush.xpose.msra.mxu0 0.0
      %1406 = vmatpush.xpose.msra.mxu0 0.0
      %1407 = vmatpush.xpose.msra.mxu0 0.0
      %1408 = vmatpush.xpose.msra.mxu0 0.0
      %1409 = vmatpush.xpose.msra.mxu0 0.0
      %1410 = vmatpush.xpose.msra.mxu0 0.0
      %1411 = vmatpush.xpose.msra.mxu0 0.0
      %1412 = vmatpush.xpose.msra.mxu0 0.0
      %1413 = vmatpush.xpose.msra.mxu0 0.0
      %1414 = vmatpush.xpose.msra.mxu0 %v1398
      %1415 = vmatpush.xpose.msra.mxu0 %v1395
      %1416 = vmatmul.f32.gmra.mxu0 %v1392
      %v1417 = vpop.f32.mrf.mxu0
      %v1418 = vadd.f32 0.0, %v1417
      %1419 = vdwg.mxu0
      %v1420 = vsel %vm757, %v1161, 0
      %v1423 = vsel %vm757, %v1067, 0
      %v1426 = vsel %vm757, %v1068, 0
      %1428 = vmatpush.xpose.msra.mxu0 0.0
      %1429 = vmatpush.xpose.msra.mxu0 0.0
      %1430 = vmatpush.xpose.msra.mxu0 0.0
      %1431 = vmatpush.xpose.msra.mxu0 0.0
      %1432 = vmatpush.xpose.msra.mxu0 0.0
      %1433 = vmatpush.xpose.msra.mxu0 0.0
      %1434 = vmatpush.xpose.msra.mxu0 0.0
      %1435 = vmatpush.xpose.msra.mxu0 0.0
      %1436 = vmatpush.xpose.msra.mxu0 0.0
      %1437 = vmatpush.xpose.msra.mxu0 0.0
      %1438 = vmatpush.xpose.msra.mxu0 0.0
      %1439 = vmatpush.xpose.msra.mxu0 0.0
      %1440 = vmatpush.xpose.msra.mxu0 0.0
      %1441 = vmatpush.xpose.msra.mxu0 0.0
      %1442 = vmatpush.xpose.msra.mxu0 %v1426
      %1443 = vmatpush.xpose.msra.mxu0 %v1423
      %1444 = vmatmul.f32.gmra.mxu0 %v1420
      %v1445 = vpop.f32.mrf.mxu0
      %v1446 = vadd.f32 0.0, %v1445
      %1447 = vdwg.mxu0
      %v1448 = vsel %vm757, %v1162, 0
      %v1451 = vsel %vm757, %v1069, 0
      %v1454 = vsel %vm757, %v1070, 0
      %1456 = vmatpush.xpose.msra.mxu0 0.0
      %1457 = vmatpush.xpose.msra.mxu0 0.0
      %1458 = vmatpush.xpose.msra.mxu0 0.0
      %1459 = vmatpush.xpose.msra.mxu0 0.0
      %1460 = vmatpush.xpose.msra.mxu0 0.0
      %1461 = vmatpush.xpose.msra.mxu0 0.0
      %1462 = vmatpush.xpose.msra.mxu0 0.0
      %1463 = vmatpush.xpose.msra.mxu0 0.0
      %1464 = vmatpush.xpose.msra.mxu0 0.0
      %1465 = vmatpush.xpose.msra.mxu0 0.0
      %1466 = vmatpush.xpose.msra.mxu0 0.0
      %1467 = vmatpush.xpose.msra.mxu0 0.0
      %1468 = vmatpush.xpose.msra.mxu0 0.0
      %1469 = vmatpush.xpose.msra.mxu0 0.0
      %1470 = vmatpush.xpose.msra.mxu0 %v1454
      %1471 = vmatpush.xpose.msra.mxu0 %v1451
      %1472 = vmatmul.f32.gmra.mxu0 %v1448
      %v1473 = vpop.f32.mrf.mxu0
      %v1474 = vadd.f32 0.0, %v1473
      %1475 = vdwg.mxu0
      %v1476 = vsel %vm757, %v1163, 0
      %v1479 = vsel %vm757, %v1071, 0
      %v1482 = vsel %vm757, %v1072, 0
      %1484 = vmatpush.xpose.msra.mxu0 0.0
      %1485 = vmatpush.xpose.msra.mxu0 0.0
      %1486 = vmatpush.xpose.msra.mxu0 0.0
      %1487 = vmatpush.xpose.msra.mxu0 0.0
      %1488 = vmatpush.xpose.msra.mxu0 0.0
      %1489 = vmatpush.xpose.msra.mxu0 0.0
      %1490 = vmatpush.xpose.msra.mxu0 0.0
      %1491 = vmatpush.xpose.msra.mxu0 0.0
      %1492 = vmatpush.xpose.msra.mxu0 0.0
      %1493 = vmatpush.xpose.msra.mxu0 0.0
      %1494 = vmatpush.xpose.msra.mxu0 0.0
      %1495 = vmatpush.xpose.msra.mxu0 0.0
      %1496 = vmatpush.xpose.msra.mxu0 0.0
      %1497 = vmatpush.xpose.msra.mxu0 0.0
      %1498 = vmatpush.xpose.msra.mxu0 %v1482
      %1499 = vmatpush.xpose.msra.mxu0 %v1479
      %1500 = vmatmul.f32.gmra.mxu0 %v1476
      %v1501 = vpop.f32.mrf.mxu0
      %v1502 = vadd.f32 0.0, %v1501
      %1503 = vdwg.mxu0
      %v1504 = vsel %vm757, %v1164, 0
      %v1507 = vsel %vm757, %v1073, 0
      %v1510 = vsel %vm757, %v1074, 0
      %1512 = vmatpush.xpose.msra.mxu0 0.0
      %1513 = vmatpush.xpose.msra.mxu0 0.0
      %1514 = vmatpush.xpose.msra.mxu0 0.0
      %1515 = vmatpush.xpose.msra.mxu0 0.0
      %1516 = vmatpush.xpose.msra.mxu0 0.0
      %1517 = vmatpush.xpose.msra.mxu0 0.0
      %1518 = vmatpush.xpose.msra.mxu0 0.0
      %1519 = vmatpush.xpose.msra.mxu0 0.0
      %1520 = vmatpush.xpose.msra.mxu0 0.0
      %1521 = vmatpush.xpose.msra.mxu0 0.0
      %1522 = vmatpush.xpose.msra.mxu0 0.0
      %1523 = vmatpush.xpose.msra.mxu0 0.0
      %1524 = vmatpush.xpose.msra.mxu0 0.0
      %1525 = vmatpush.xpose.msra.mxu0 0.0
      %1526 = vmatpush.xpose.msra.mxu0 %v1510
      %1527 = vmatpush.xpose.msra.mxu0 %v1507
      %1528 = vmatmul.f32.gmra.mxu0 %v1504
      %v1529 = vpop.f32.mrf.mxu0
      %v1530 = vadd.f32 0.0, %v1529
      %1531 = vdwg.mxu0
      %v1532 = vsel %vm757, %v1165, 0
      %v1535 = vsel %vm757, %v1075, 0
      %v1538 = vsel %vm757, %v1076, 0
      %1540 = vmatpush.xpose.msra.mxu0 0.0
      %1541 = vmatpush.xpose.msra.mxu0 0.0
      %1542 = vmatpush.xpose.msra.mxu0 0.0
      %1543 = vmatpush.xpose.msra.mxu0 0.0
      %1544 = vmatpush.xpose.msra.mxu0 0.0
      %1545 = vmatpush.xpose.msra.mxu0 0.0
      %1546 = vmatpush.xpose.msra.mxu0 0.0
      %1547 = vmatpush.xpose.msra.mxu0 0.0
      %1548 = vmatpush.xpose.msra.mxu0 0.0
      %1549 = vmatpush.xpose.msra.mxu0 0.0
      %1550 = vmatpush.xpose.msra.mxu0 0.0
      %1551 = vmatpush.xpose.msra.mxu0 0.0
      %1552 = vmatpush.xpose.msra.mxu0 0.0
      %1553 = vmatpush.xpose.msra.mxu0 0.0
      %1554 = vmatpush.xpose.msra.mxu0 %v1538
      %1555 = vmatpush.xpose.msra.mxu0 %v1535
      %1556 = vmatmul.f32.gmra.mxu0 %v1532
      %v1557 = vpop.f32.mrf.mxu0
      %v1558 = vadd.f32 0.0, %v1557
      %1559 = vdwg.mxu0
      %v1560 = vsel %vm757, %v1166, 0
      %v1563 = vsel %vm757, %v1077, 0
      %v1566 = vsel %vm757, %v1078, 0
      %1568 = vmatpush.xpose.msra.mxu0 0.0
      %1569 = vmatpush.xpose.msra.mxu0 0.0
      %1570 = vmatpush.xpose.msra.mxu0 0.0
      %1571 = vmatpush.xpose.msra.mxu0 0.0
      %1572 = vmatpush.xpose.msra.mxu0 0.0
      %1573 = vmatpush.xpose.msra.mxu0 0.0
      %1574 = vmatpush.xpose.msra.mxu0 0.0
      %1575 = vmatpush.xpose.msra.mxu0 0.0
      %1576 = vmatpush.xpose.msra.mxu0 0.0
      %1577 = vmatpush.xpose.msra.mxu0 0.0
      %1578 = vmatpush.xpose.msra.mxu0 0.0
      %1579 = vmatpush.xpose.msra.mxu0 0.0
      %1580 = vmatpush.xpose.msra.mxu0 0.0
      %1581 = vmatpush.xpose.msra.mxu0 0.0
      %1582 = vmatpush.xpose.msra.mxu0 %v1566
      %1583 = vmatpush.xpose.msra.mxu0 %v1563
      %1584 = vmatmul.f32.gmra.mxu0 %v1560
      %v1585 = vpop.f32.mrf.mxu0
      %v1586 = vadd.f32 0.0, %v1585
      %1587 = vdwg.mxu0
      %v1588 = vsel %vm757, %v1167, 0
      %v1591 = vsel %vm757, %v1079, 0
      %v1594 = vsel %vm757, %v1080, 0
      %1596 = vmatpush.xpose.msra.mxu0 0.0
      %1597 = vmatpush.xpose.msra.mxu0 0.0
      %1598 = vmatpush.xpose.msra.mxu0 0.0
      %1599 = vmatpush.xpose.msra.mxu0 0.0
      %1600 = vmatpush.xpose.msra.mxu0 0.0
      %1601 = vmatpush.xpose.msra.mxu0 0.0
      %1602 = vmatpush.xpose.msra.mxu0 0.0
      %1603 = vmatpush.xpose.msra.mxu0 0.0
      %1604 = vmatpush.xpose.msra.mxu0 0.0
      %1605 = vmatpush.xpose.msra.mxu0 0.0
      %1606 = vmatpush.xpose.msra.mxu0 0.0
      %1607 = vmatpush.xpose.msra.mxu0 0.0
      %1608 = vmatpush.xpose.msra.mxu0 0.0
      %1609 = vmatpush.xpose.msra.mxu0 0.0
      %1610 = vmatpush.xpose.msra.mxu0 %v1594
      %1611 = vmatpush.xpose.msra.mxu0 %v1591
      %1612 = vmatmul.f32.gmra.mxu0 %v1588
      %v1613 = vpop.f32.mrf.mxu0
      %v1614 = vadd.f32 0.0, %v1613
      %1615 = vdwg.mxu0
      %v1616 = vlaneseq
      %v1617 = vand.u32 %v1616, 127
      %vm1618 = vcmp.lt.s32.totalorder %v1617, 12
      %v1619 = vsel %vm1618, 1, 0
      %vm1620 = vcmp.eq.s32.totalorder %v1619, 1
      %v1621 = vsel %vm1620, %v1194, -1e+30
      %v1622 = vsel %vm1620, %v1222, -1e+30
      %v1623 = vsel %vm1620, %v1250, -1e+30
      %v1624 = vsel %vm1620, %v1278, -1e+30
      %v1625 = vsel %vm1620, %v1306, -1e+30
      %v1626 = vsel %vm1620, %v1334, -1e+30
      %v1627 = vsel %vm1620, %v1362, -1e+30
      %v1628 = vsel %vm1620, %v1390, -1e+30
      %v1629 = vsel %vm1620, %v1418, -1e+30
      %v1630 = vsel %vm1620, %v1446, -1e+30
      %v1631 = vsel %vm1620, %v1474, -1e+30
      %v1632 = vsel %vm1620, %v1502, -1e+30
      %v1633 = vsel %vm1620, %v1530, -1e+30
      %v1634 = vsel %vm1620, %v1558, -1e+30
      %v1635 = vsel %vm1620, %v1586, -1e+30
      %v1636 = vsel %vm1620, %v1614, -1e+30
      %vm1637 = vcmask 122880
      %v1638 = vsel %vm1637, %v1621, -inf
      %1639 = vmax.xlane.f32.xlu0 %v1638
      %v1640 = vpop.xlane.xlu0 %1639
      %v1641 = vsel %vm1637, %v1622, -inf
      %1642 = vmax.xlane.f32.xlu0 %v1641
      %v1643 = vpop.xlane.xlu0 %1642
      %v1644 = vsel %vm1637, %v1623, -inf
      %1645 = vmax.xlane.f32.xlu0 %v1644
      %v1646 = vpop.xlane.xlu0 %1645
      %v1647 = vsel %vm1637, %v1624, -inf
      %1648 = vmax.xlane.f32.xlu0 %v1647
      %v1649 = vpop.xlane.xlu0 %1648
      %v1650 = vsel %vm1637, %v1625, -inf
      %1651 = vmax.xlane.f32.xlu0 %v1650
      %v1652 = vpop.xlane.xlu0 %1651
      %v1653 = vsel %vm1637, %v1626, -inf
      %1654 = vmax.xlane.f32.xlu0 %v1653
      %v1655 = vpop.xlane.xlu0 %1654
      %v1656 = vsel %vm1637, %v1627, -inf
      %1657 = vmax.xlane.f32.xlu0 %v1656
      %v1658 = vpop.xlane.xlu0 %1657
      %v1659 = vsel %vm1637, %v1628, -inf
      %1660 = vmax.xlane.f32.xlu0 %v1659
      %v1661 = vpop.xlane.xlu0 %1660
      %v1662 = vsel %vm1637, %v1629, -inf
      %1663 = vmax.xlane.f32.xlu0 %v1662
      %v1664 = vpop.xlane.xlu0 %1663
      %v1665 = vsel %vm1637, %v1630, -inf
      %1666 = vmax.xlane.f32.xlu0 %v1665
      %v1667 = vpop.xlane.xlu0 %1666
      %v1668 = vsel %vm1637, %v1631, -inf
      %1669 = vmax.xlane.f32.xlu0 %v1668
      %v1670 = vpop.xlane.xlu0 %1669
      %v1671 = vsel %vm1637, %v1632, -inf
      %1672 = vmax.xlane.f32.xlu0 %v1671
      %v1673 = vpop.xlane.xlu0 %1672
      %v1674 = vsel %vm1637, %v1633, -inf
      %1675 = vmax.xlane.f32.xlu0 %v1674
      %v1676 = vpop.xlane.xlu0 %1675
      %v1677 = vsel %vm1637, %v1634, -inf
      %1678 = vmax.xlane.f32.xlu0 %v1677
      %v1679 = vpop.xlane.xlu0 %1678
      %v1680 = vsel %vm1637, %v1635, -inf
      %1681 = vmax.xlane.f32.xlu0 %v1680
      %v1682 = vpop.xlane.xlu0 %1681
      %v1683 = vsel %vm1637, %v1636, -inf
      %1684 = vmax.xlane.f32.xlu0 %v1683
      %v1685 = vpop.xlane.xlu0 %1684
      %v1686 = vsub.f32 %v1621, %v1640
      %v1687 = vsub.f32 %v1622, %v1643
      %v1688 = vsub.f32 %v1623, %v1646
      %v1689 = vsub.f32 %v1624, %v1649
      %v1690 = vsub.f32 %v1625, %v1652
      %v1691 = vsub.f32 %v1626, %v1655
      %v1692 = vsub.f32 %v1627, %v1658
      %v1693 = vsub.f32 %v1628, %v1661
      %v1694 = vsub.f32 %v1629, %v1664
      %v1695 = vsub.f32 %v1630, %v1667
      %v1696 = vsub.f32 %v1631, %v1670
      %v1697 = vsub.f32 %v1632, %v1673
      %v1698 = vsub.f32 %v1633, %v1676
      %v1699 = vsub.f32 %v1634, %v1679
      %v1700 = vsub.f32 %v1635, %v1682
      %v1701 = vsub.f32 %v1636, %v1685
      %v1702 = vmul.f32 %v1686, 1.442695
      %v1703 = vpow.pop %v1702
      %v1704 = vmul.f32 %v1687, 1.442695
      %v1705 = vpow.pop %v1704
      %v1706 = vmul.f32 %v1688, 1.442695
      %v1707 = vpow.pop %v1706
      %v1708 = vmul.f32 %v1689, 1.442695
      %v1709 = vpow.pop %v1708
      %v1710 = vmul.f32 %v1690, 1.442695
      %v1711 = vpow.pop %v1710
      %v1712 = vmul.f32 %v1691, 1.442695
      %v1713 = vpow.pop %v1712
      %v1714 = vmul.f32 %v1692, 1.442695
      %v1715 = vpow.pop %v1714
      %v1716 = vmul.f32 %v1693, 1.442695
      %v1717 = vpow.pop %v1716
      %v1718 = vmul.f32 %v1694, 1.442695
      %v1719 = vpow.pop %v1718
      %v1720 = vmul.f32 %v1695, 1.442695
      %v1721 = vpow.pop %v1720
      %v1722 = vmul.f32 %v1696, 1.442695
      %v1723 = vpow.pop %v1722
      %v1724 = vmul.f32 %v1697, 1.442695
      %v1725 = vpow.pop %v1724
      %v1726 = vmul.f32 %v1698, 1.442695
      %v1727 = vpow.pop %v1726
      %v1728 = vmul.f32 %v1699, 1.442695
      %v1729 = vpow.pop %v1728
      %v1730 = vmul.f32 %v1700, 1.442695
      %v1731 = vpow.pop %v1730
      %v1732 = vmul.f32 %v1701, 1.442695
      %v1733 = vpow.pop %v1732
      %v1734 = vsel %vm1637, %v1703, 0.0
      %1735 = vadd.xlane.f32.xlu0 %v1734
      %v1736 = vpop.xlane.xlu0 %1735
      %v1737 = vsel %vm1637, %v1705, 0.0
      %1738 = vadd.xlane.f32.xlu0 %v1737
      %v1739 = vpop.xlane.xlu0 %1738
      %v1740 = vsel %vm1637, %v1707, 0.0
      %1741 = vadd.xlane.f32.xlu0 %v1740
      %v1742 = vpop.xlane.xlu0 %1741
      %v1743 = vsel %vm1637, %v1709, 0.0
      %1744 = vadd.xlane.f32.xlu0 %v1743
      %v1745 = vpop.xlane.xlu0 %1744
      %v1746 = vsel %vm1637, %v1711, 0.0
      %1747 = vadd.xlane.f32.xlu0 %v1746
      %v1748 = vpop.xlane.xlu0 %1747
      %v1749 = vsel %vm1637, %v1713, 0.0
      %1750 = vadd.xlane.f32.xlu0 %v1749
      %v1751 = vpop.xlane.xlu0 %1750
      %v1752 = vsel %vm1637, %v1715, 0.0
      %1753 = vadd.xlane.f32.xlu0 %v1752
      %v1754 = vpop.xlane.xlu0 %1753
      %v1755 = vsel %vm1637, %v1717, 0.0
      %1756 = vadd.xlane.f32.xlu0 %v1755
      %v1757 = vpop.xlane.xlu0 %1756
      %v1758 = vsel %vm1637, %v1719, 0.0
      %1759 = vadd.xlane.f32.xlu0 %v1758
      %v1760 = vpop.xlane.xlu0 %1759
      %v1761 = vsel %vm1637, %v1721, 0.0
      %1762 = vadd.xlane.f32.xlu0 %v1761
      %v1763 = vpop.xlane.xlu0 %1762
      %v1764 = vsel %vm1637, %v1723, 0.0
      %1765 = vadd.xlane.f32.xlu0 %v1764
      %v1766 = vpop.xlane.xlu0 %1765
      %v1767 = vsel %vm1637, %v1725, 0.0
      %1768 = vadd.xlane.f32.xlu0 %v1767
      %v1769 = vpop.xlane.xlu0 %1768
      %v1770 = vsel %vm1637, %v1727, 0.0
      %1771 = vadd.xlane.f32.xlu0 %v1770
      %v1772 = vpop.xlane.xlu0 %1771
      %v1773 = vsel %vm1637, %v1729, 0.0
      %1774 = vadd.xlane.f32.xlu0 %v1773
      %v1775 = vpop.xlane.xlu0 %1774
      %v1776 = vsel %vm1637, %v1731, 0.0
      %1777 = vadd.xlane.f32.xlu0 %v1776
      %v1778 = vpop.xlane.xlu0 %1777
      %v1779 = vsel %vm1637, %v1733, 0.0
      %1780 = vadd.xlane.f32.xlu0 %v1779
      %v1781 = vpop.xlane.xlu0 %1780
      %v1782 = vrcp.pop %v1736
      %v1783 = vrcp.pop %v1739
      %v1784 = vrcp.pop %v1742
      %v1785 = vrcp.pop %v1745
      %v1786 = vrcp.pop %v1748
      %v1787 = vrcp.pop %v1751
      %v1788 = vrcp.pop %v1754
      %v1789 = vrcp.pop %v1757
      %v1790 = vrcp.pop %v1760
      %v1791 = vrcp.pop %v1763
      %v1792 = vrcp.pop %v1766
      %v1793 = vrcp.pop %v1769
      %v1794 = vrcp.pop %v1772
      %v1795 = vrcp.pop %v1775
      %v1796 = vrcp.pop %v1778
      %v1797 = vrcp.pop %v1781
      %v1798 = vmul.f32 %v1703, %v1782
      %v1799 = vmul.f32 %v1705, %v1783
      %v1800 = vmul.f32 %v1707, %v1784
      %v1801 = vmul.f32 %v1709, %v1785
      %v1802 = vmul.f32 %v1711, %v1786
      %v1803 = vmul.f32 %v1713, %v1787
      %v1804 = vmul.f32 %v1715, %v1788
      %v1805 = vmul.f32 %v1717, %v1789
      %v1806 = vmul.f32 %v1719, %v1790
      %v1807 = vmul.f32 %v1721, %v1791
      %v1808 = vmul.f32 %v1723, %v1792
      %v1809 = vmul.f32 %v1725, %v1793
      %v1810 = vmul.f32 %v1727, %v1794
      %v1811 = vmul.f32 %v1729, %v1795
      %v1812 = vmul.f32 %v1731, %v1796
      %v1813 = vmul.f32 %v1733, %v1797
      %v1815 = vsel %vm1089, %v1798, 0
      %1817 = vmatpush.msra.mxu0 0.0
      %1818 = vmatpush.msra.mxu0 0.0
      %1819 = vmatpush.msra.mxu0 0.0
      %1820 = vmatpush.msra.mxu0 0.0
      %1821 = vmatpush.msra.mxu0 0.0
      %1822 = vmatpush.msra.mxu0 0.0
      %1823 = vmatpush.msra.mxu0 0.0
      %1824 = vmatpush.msra.mxu0 0.0
      %1825 = vmatpush.msra.mxu0 0.0
      %1826 = vmatpush.msra.mxu0 0.0
      %1827 = vmatpush.msra.mxu0 0.0
      %1828 = vmatpush.msra.mxu0 0.0
      %1829 = vmatpush.msra.mxu0 0.0
      %1830 = vmatpush.msra.mxu0 0.0
      %1831 = vmatpush.msra.mxu0 %v1050
      %1832 = vmatpush.msra.mxu0 %v1049
      %1833 = vmatmul.f32.gmra.mxu0 %v1815
      %v1834 = vpop.f32.mrf.mxu0
      %v1835 = vadd.f32 0.0, %v1834
      %1836 = vdwg.mxu0
      %v1838 = vsel %vm1089, %v1799, 0
      %1840 = vmatpush.msra.mxu0 0.0
      %1841 = vmatpush.msra.mxu0 0.0
      %1842 = vmatpush.msra.mxu0 0.0
      %1843 = vmatpush.msra.mxu0 0.0
      %1844 = vmatpush.msra.mxu0 0.0
      %1845 = vmatpush.msra.mxu0 0.0
      %1846 = vmatpush.msra.mxu0 0.0
      %1847 = vmatpush.msra.mxu0 0.0
      %1848 = vmatpush.msra.mxu0 0.0
      %1849 = vmatpush.msra.mxu0 0.0
      %1850 = vmatpush.msra.mxu0 0.0
      %1851 = vmatpush.msra.mxu0 0.0
      %1852 = vmatpush.msra.mxu0 0.0
      %1853 = vmatpush.msra.mxu0 0.0
      %1854 = vmatpush.msra.mxu0 %v1052
      %1855 = vmatpush.msra.mxu0 %v1051
      %1856 = vmatmul.f32.gmra.mxu0 %v1838
      %v1857 = vpop.f32.mrf.mxu0
      %v1858 = vadd.f32 0.0, %v1857
      %1859 = vdwg.mxu0
      %v1861 = vsel %vm1089, %v1800, 0
      %1863 = vmatpush.msra.mxu0 0.0
      %1864 = vmatpush.msra.mxu0 0.0
      %1865 = vmatpush.msra.mxu0 0.0
      %1866 = vmatpush.msra.mxu0 0.0
      %1867 = vmatpush.msra.mxu0 0.0
      %1868 = vmatpush.msra.mxu0 0.0
      %1869 = vmatpush.msra.mxu0 0.0
      %1870 = vmatpush.msra.mxu0 0.0
      %1871 = vmatpush.msra.mxu0 0.0
      %1872 = vmatpush.msra.mxu0 0.0
      %1873 = vmatpush.msra.mxu0 0.0
      %1874 = vmatpush.msra.mxu0 0.0
      %1875 = vmatpush.msra.mxu0 0.0
      %1876 = vmatpush.msra.mxu0 0.0
      %1877 = vmatpush.msra.mxu0 %v1054
      %1878 = vmatpush.msra.mxu0 %v1053
      %1879 = vmatmul.f32.gmra.mxu0 %v1861
      %v1880 = vpop.f32.mrf.mxu0
      %v1881 = vadd.f32 0.0, %v1880
      %1882 = vdwg.mxu0
      %v1884 = vsel %vm1089, %v1801, 0
      %1886 = vmatpush.msra.mxu0 0.0
      %1887 = vmatpush.msra.mxu0 0.0
      %1888 = vmatpush.msra.mxu0 0.0
      %1889 = vmatpush.msra.mxu0 0.0
      %1890 = vmatpush.msra.mxu0 0.0
      %1891 = vmatpush.msra.mxu0 0.0
      %1892 = vmatpush.msra.mxu0 0.0
      %1893 = vmatpush.msra.mxu0 0.0
      %1894 = vmatpush.msra.mxu0 0.0
      %1895 = vmatpush.msra.mxu0 0.0
      %1896 = vmatpush.msra.mxu0 0.0
      %1897 = vmatpush.msra.mxu0 0.0
      %1898 = vmatpush.msra.mxu0 0.0
      %1899 = vmatpush.msra.mxu0 0.0
      %1900 = vmatpush.msra.mxu0 %v1056
      %1901 = vmatpush.msra.mxu0 %v1055
      %1902 = vmatmul.f32.gmra.mxu0 %v1884
      %v1903 = vpop.f32.mrf.mxu0
      %v1904 = vadd.f32 0.0, %v1903
      %1905 = vdwg.mxu0
      %v1907 = vsel %vm1089, %v1802, 0
      %1909 = vmatpush.msra.mxu0 0.0
      %1910 = vmatpush.msra.mxu0 0.0
      %1911 = vmatpush.msra.mxu0 0.0
      %1912 = vmatpush.msra.mxu0 0.0
      %1913 = vmatpush.msra.mxu0 0.0
      %1914 = vmatpush.msra.mxu0 0.0
      %1915 = vmatpush.msra.mxu0 0.0
      %1916 = vmatpush.msra.mxu0 0.0
      %1917 = vmatpush.msra.mxu0 0.0
      %1918 = vmatpush.msra.mxu0 0.0
      %1919 = vmatpush.msra.mxu0 0.0
      %1920 = vmatpush.msra.mxu0 0.0
      %1921 = vmatpush.msra.mxu0 0.0
      %1922 = vmatpush.msra.mxu0 0.0
      %1923 = vmatpush.msra.mxu0 %v1058
      %1924 = vmatpush.msra.mxu0 %v1057
      %1925 = vmatmul.f32.gmra.mxu0 %v1907
      %v1926 = vpop.f32.mrf.mxu0
      %v1927 = vadd.f32 0.0, %v1926
      %1928 = vdwg.mxu0
      %v1930 = vsel %vm1089, %v1803, 0
      %1932 = vmatpush.msra.mxu0 0.0
      %1933 = vmatpush.msra.mxu0 0.0
      %1934 = vmatpush.msra.mxu0 0.0
      %1935 = vmatpush.msra.mxu0 0.0
      %1936 = vmatpush.msra.mxu0 0.0
      %1937 = vmatpush.msra.mxu0 0.0
      %1938 = vmatpush.msra.mxu0 0.0
      %1939 = vmatpush.msra.mxu0 0.0
      %1940 = vmatpush.msra.mxu0 0.0
      %1941 = vmatpush.msra.mxu0 0.0
      %1942 = vmatpush.msra.mxu0 0.0
      %1943 = vmatpush.msra.mxu0 0.0
      %1944 = vmatpush.msra.mxu0 0.0
      %1945 = vmatpush.msra.mxu0 0.0
      %1946 = vmatpush.msra.mxu0 %v1060
      %1947 = vmatpush.msra.mxu0 %v1059
      %1948 = vmatmul.f32.gmra.mxu0 %v1930
      %v1949 = vpop.f32.mrf.mxu0
      %v1950 = vadd.f32 0.0, %v1949
      %1951 = vdwg.mxu0
      %v1953 = vsel %vm1089, %v1804, 0
      %1955 = vmatpush.msra.mxu0 0.0
      %1956 = vmatpush.msra.mxu0 0.0
      %1957 = vmatpush.msra.mxu0 0.0
      %1958 = vmatpush.msra.mxu0 0.0
      %1959 = vmatpush.msra.mxu0 0.0
      %1960 = vmatpush.msra.mxu0 0.0
      %1961 = vmatpush.msra.mxu0 0.0
      %1962 = vmatpush.msra.mxu0 0.0
      %1963 = vmatpush.msra.mxu0 0.0
      %1964 = vmatpush.msra.mxu0 0.0
      %1965 = vmatpush.msra.mxu0 0.0
      %1966 = vmatpush.msra.mxu0 0.0
      %1967 = vmatpush.msra.mxu0 0.0
      %1968 = vmatpush.msra.mxu0 0.0
      %1969 = vmatpush.msra.mxu0 %v1062
      %1970 = vmatpush.msra.mxu0 %v1061
      %1971 = vmatmul.f32.gmra.mxu0 %v1953
      %v1972 = vpop.f32.mrf.mxu0
      %v1973 = vadd.f32 0.0, %v1972
      %1974 = vdwg.mxu0
      %v1976 = vsel %vm1089, %v1805, 0
      %1978 = vmatpush.msra.mxu0 0.0
      %1979 = vmatpush.msra.mxu0 0.0
      %1980 = vmatpush.msra.mxu0 0.0
      %1981 = vmatpush.msra.mxu0 0.0
      %1982 = vmatpush.msra.mxu0 0.0
      %1983 = vmatpush.msra.mxu0 0.0
      %1984 = vmatpush.msra.mxu0 0.0
      %1985 = vmatpush.msra.mxu0 0.0
      %1986 = vmatpush.msra.mxu0 0.0
      %1987 = vmatpush.msra.mxu0 0.0
      %1988 = vmatpush.msra.mxu0 0.0
      %1989 = vmatpush.msra.mxu0 0.0
      %1990 = vmatpush.msra.mxu0 0.0
      %1991 = vmatpush.msra.mxu0 0.0
      %1992 = vmatpush.msra.mxu0 %v1064
      %1993 = vmatpush.msra.mxu0 %v1063
      %1994 = vmatmul.f32.gmra.mxu0 %v1976
      %v1995 = vpop.f32.mrf.mxu0
      %v1996 = vadd.f32 0.0, %v1995
      %1997 = vdwg.mxu0
      %v1999 = vsel %vm1089, %v1806, 0
      %2001 = vmatpush.msra.mxu0 0.0
      %2002 = vmatpush.msra.mxu0 0.0
      %2003 = vmatpush.msra.mxu0 0.0
      %2004 = vmatpush.msra.mxu0 0.0
      %2005 = vmatpush.msra.mxu0 0.0
      %2006 = vmatpush.msra.mxu0 0.0
      %2007 = vmatpush.msra.mxu0 0.0
      %2008 = vmatpush.msra.mxu0 0.0
      %2009 = vmatpush.msra.mxu0 0.0
      %2010 = vmatpush.msra.mxu0 0.0
      %2011 = vmatpush.msra.mxu0 0.0
      %2012 = vmatpush.msra.mxu0 0.0
      %2013 = vmatpush.msra.mxu0 0.0
      %2014 = vmatpush.msra.mxu0 0.0
      %2015 = vmatpush.msra.mxu0 %v1066
      %2016 = vmatpush.msra.mxu0 %v1065
      %2017 = vmatmul.f32.gmra.mxu0 %v1999
      %v2018 = vpop.f32.mrf.mxu0
      %v2019 = vadd.f32 0.0, %v2018
      %2020 = vdwg.mxu0
      %v2022 = vsel %vm1089, %v1807, 0
      %2024 = vmatpush.msra.mxu0 0.0
      %2025 = vmatpush.msra.mxu0 0.0
      %2026 = vmatpush.msra.mxu0 0.0
      %2027 = vmatpush.msra.mxu0 0.0
      %2028 = vmatpush.msra.mxu0 0.0
      %2029 = vmatpush.msra.mxu0 0.0
      %2030 = vmatpush.msra.mxu0 0.0
      %2031 = vmatpush.msra.mxu0 0.0
      %2032 = vmatpush.msra.mxu0 0.0
      %2033 = vmatpush.msra.mxu0 0.0
      %2034 = vmatpush.msra.mxu0 0.0
      %2035 = vmatpush.msra.mxu0 0.0
      %2036 = vmatpush.msra.mxu0 0.0
      %2037 = vmatpush.msra.mxu0 0.0
      %2038 = vmatpush.msra.mxu0 %v1068
      %2039 = vmatpush.msra.mxu0 %v1067
      %2040 = vmatmul.f32.gmra.mxu0 %v2022
      %v2041 = vpop.f32.mrf.mxu0
      %v2042 = vadd.f32 0.0, %v2041
      %2043 = vdwg.mxu0
      %v2045 = vsel %vm1089, %v1808, 0
      %2047 = vmatpush.msra.mxu0 0.0
      %2048 = vmatpush.msra.mxu0 0.0
      %2049 = vmatpush.msra.mxu0 0.0
      %2050 = vmatpush.msra.mxu0 0.0
      %2051 = vmatpush.msra.mxu0 0.0
      %2052 = vmatpush.msra.mxu0 0.0
      %2053 = vmatpush.msra.mxu0 0.0
      %2054 = vmatpush.msra.mxu0 0.0
      %2055 = vmatpush.msra.mxu0 0.0
      %2056 = vmatpush.msra.mxu0 0.0
      %2057 = vmatpush.msra.mxu0 0.0
      %2058 = vmatpush.msra.mxu0 0.0
      %2059 = vmatpush.msra.mxu0 0.0
      %2060 = vmatpush.msra.mxu0 0.0
      %2061 = vmatpush.msra.mxu0 %v1070
      %2062 = vmatpush.msra.mxu0 %v1069
      %2063 = vmatmul.f32.gmra.mxu0 %v2045
      %v2064 = vpop.f32.mrf.mxu0
      %v2065 = vadd.f32 0.0, %v2064
      %2066 = vdwg.mxu0
      %v2068 = vsel %vm1089, %v1809, 0
      %2070 = vmatpush.msra.mxu0 0.0
      %2071 = vmatpush.msra.mxu0 0.0
      %2072 = vmatpush.msra.mxu0 0.0
      %2073 = vmatpush.msra.mxu0 0.0
      %2074 = vmatpush.msra.mxu0 0.0
      %2075 = vmatpush.msra.mxu0 0.0
      %2076 = vmatpush.msra.mxu0 0.0
      %2077 = vmatpush.msra.mxu0 0.0
      %2078 = vmatpush.msra.mxu0 0.0
      %2079 = vmatpush.msra.mxu0 0.0
      %2080 = vmatpush.msra.mxu0 0.0
      %2081 = vmatpush.msra.mxu0 0.0
      %2082 = vmatpush.msra.mxu0 0.0
      %2083 = vmatpush.msra.mxu0 0.0
      %2084 = vmatpush.msra.mxu0 %v1072
      %2085 = vmatpush.msra.mxu0 %v1071
      %2086 = vmatmul.f32.gmra.mxu0 %v2068
      %v2087 = vpop.f32.mrf.mxu0
      %v2088 = vadd.f32 0.0, %v2087
      %2089 = vdwg.mxu0
      %v2091 = vsel %vm1089, %v1810, 0
      %2093 = vmatpush.msra.mxu0 0.0
      %2094 = vmatpush.msra.mxu0 0.0
      %2095 = vmatpush.msra.mxu0 0.0
      %2096 = vmatpush.msra.mxu0 0.0
      %2097 = vmatpush.msra.mxu0 0.0
      %2098 = vmatpush.msra.mxu0 0.0
      %2099 = vmatpush.msra.mxu0 0.0
      %2100 = vmatpush.msra.mxu0 0.0
      %2101 = vmatpush.msra.mxu0 0.0
      %2102 = vmatpush.msra.mxu0 0.0
      %2103 = vmatpush.msra.mxu0 0.0
      %2104 = vmatpush.msra.mxu0 0.0
      %2105 = vmatpush.msra.mxu0 0.0
      %2106 = vmatpush.msra.mxu0 0.0
      %2107 = vmatpush.msra.mxu0 %v1074
      %2108 = vmatpush.msra.mxu0 %v1073
      %2109 = vmatmul.f32.gmra.mxu0 %v2091
      %v2110 = vpop.f32.mrf.mxu0
      %v2111 = vadd.f32 0.0, %v2110
      %2112 = vdwg.mxu0
      %v2114 = vsel %vm1089, %v1811, 0
      %2116 = vmatpush.msra.mxu0 0.0
      %2117 = vmatpush.msra.mxu0 0.0
      %2118 = vmatpush.msra.mxu0 0.0
      %2119 = vmatpush.msra.mxu0 0.0
      %2120 = vmatpush.msra.mxu0 0.0
      %2121 = vmatpush.msra.mxu0 0.0
      %2122 = vmatpush.msra.mxu0 0.0
      %2123 = vmatpush.msra.mxu0 0.0
      %2124 = vmatpush.msra.mxu0 0.0
      %2125 = vmatpush.msra.mxu0 0.0
      %2126 = vmatpush.msra.mxu0 0.0
      %2127 = vmatpush.msra.mxu0 0.0
      %2128 = vmatpush.msra.mxu0 0.0
      %2129 = vmatpush.msra.mxu0 0.0
      %2130 = vmatpush.msra.mxu0 %v1076
      %2131 = vmatpush.msra.mxu0 %v1075
      %2132 = vmatmul.f32.gmra.mxu0 %v2114
      %v2133 = vpop.f32.mrf.mxu0
      %v2134 = vadd.f32 0.0, %v2133
      %2135 = vdwg.mxu0
      %v2137 = vsel %vm1089, %v1812, 0
      %2139 = vmatpush.msra.mxu0 0.0
      %2140 = vmatpush.msra.mxu0 0.0
      %2141 = vmatpush.msra.mxu0 0.0
      %2142 = vmatpush.msra.mxu0 0.0
      %2143 = vmatpush.msra.mxu0 0.0
      %2144 = vmatpush.msra.mxu0 0.0
      %2145 = vmatpush.msra.mxu0 0.0
      %2146 = vmatpush.msra.mxu0 0.0
      %2147 = vmatpush.msra.mxu0 0.0
      %2148 = vmatpush.msra.mxu0 0.0
      %2149 = vmatpush.msra.mxu0 0.0
      %2150 = vmatpush.msra.mxu0 0.0
      %2151 = vmatpush.msra.mxu0 0.0
      %2152 = vmatpush.msra.mxu0 0.0
      %2153 = vmatpush.msra.mxu0 %v1078
      %2154 = vmatpush.msra.mxu0 %v1077
      %2155 = vmatmul.f32.gmra.mxu0 %v2137
      %v2156 = vpop.f32.mrf.mxu0
      %v2157 = vadd.f32 0.0, %v2156
      %2158 = vdwg.mxu0
      %v2160 = vsel %vm1089, %v1813, 0
      %2162 = vmatpush.msra.mxu0 0.0
      %2163 = vmatpush.msra.mxu0 0.0
      %2164 = vmatpush.msra.mxu0 0.0
      %2165 = vmatpush.msra.mxu0 0.0
      %2166 = vmatpush.msra.mxu0 0.0
      %2167 = vmatpush.msra.mxu0 0.0
      %2168 = vmatpush.msra.mxu0 0.0
      %2169 = vmatpush.msra.mxu0 0.0
      %2170 = vmatpush.msra.mxu0 0.0
      %2171 = vmatpush.msra.mxu0 0.0
      %2172 = vmatpush.msra.mxu0 0.0
      %2173 = vmatpush.msra.mxu0 0.0
      %2174 = vmatpush.msra.mxu0 0.0
      %2175 = vmatpush.msra.mxu0 0.0
      %2176 = vmatpush.msra.mxu0 %v1080
      %2177 = vmatpush.msra.mxu0 %v1079
      %2178 = vmatmul.f32.gmra.mxu0 %v2160
      %v2179 = vpop.f32.mrf.mxu0
      %v2180 = vadd.f32 0.0, %v2179
      %2181 = vdwg.mxu0
      %v2198 = vrot.slane %v1858, 7
      %vm2199 = vcmask 1041409
      %v2200 = vsel %vm2199, %v2198, %v1835
      %v2201 = vrot.slane %v1881, 6
      %vm2202 = vcmask 1042434
      %v2203 = vsel %vm2202, %v2201, %v2200
      %v2204 = vrot.slane %v1904, 5
      %vm2205 = vcmask 1043459
      %v2206 = vsel %vm2205, %v2204, %v2203
      %v2207 = vrot.slane %v1927, 4
      %vm2208 = vcmask 1044484
      %v2209 = vsel %vm2208, %v2207, %v2206
      %v2210 = vrot.slane %v1950, 3
      %vm2211 = vcmask 1045509
      %v2212 = vsel %vm2211, %v2210, %v2209
      %v2213 = vrot.slane %v1973, 2
      %vm2214 = vcmask 1046534
      %v2215 = vsel %vm2214, %v2213, %v2212
      %v2216 = vrot.slane %v1996, 1
      %vm2217 = vcmask 1047559
      %v2218 = vsel %vm2217, %v2216, %v2215
      %v2219 = vrot.slane %v2042, 7
      %v2220 = vsel %vm2199, %v2219, %v2019
      %v2221 = vrot.slane %v2065, 6
      %v2222 = vsel %vm2202, %v2221, %v2220
      %v2223 = vrot.slane %v2088, 5
      %v2224 = vsel %vm2205, %v2223, %v2222
      %v2225 = vrot.slane %v2111, 4
      %v2226 = vsel %vm2208, %v2225, %v2224
      %v2227 = vrot.slane %v2134, 3
      %v2228 = vsel %vm2211, %v2227, %v2226
      %v2229 = vrot.slane %v2157, 2
      %v2230 = vsel %vm2214, %v2229, %v2228
      %v2231 = vrot.slane %v2180, 1
      %v2232 = vsel %vm2217, %v2231, %v2230
      %2235 = vst.msk [vmem:[%s305] sm:$0xff] %vm757, %v2218
      %2236 = vst.msk [vmem:[%s305 + $0x8] sm:$0xff] %vm757, %v2232
      %s2237 = smul.u32 2, %s18
      %p2238 = scmp.lt.s32.totalorder %s2237, 3
      %s2239 = scalar_select %p2238, %s2237, 3
      %s2240 = smul.addr %s2239, 8
      %s2241 = scalar_lea.vmem %s7, %s2240
      // Predicated region
      $region49: #{review_encoder_forward.1} parent=47 // pred_check
        %p2242 = pneg %p193
      $region50: #{review_encoder_forward.1} parent=47 // pred_check_branch
        %2244 = sbr.rel (%p2242) target = $region52
      $region51: #{review_encoder_forward.1} parent=47 // pred_region
        %s2245 = smul.u32 2, %s18
      $region52: #{review_encoder_forward.1} parent=47 // pred_fallthru
        _
    $region48: #{review_encoder_forward.1} parent=5 // pred_fallthru
      _
    %p2246 = scmp.le.s32.totalorder 2, %s13
    // Predicated region
    $region53: #{review_encoder_forward.1} parent=5 // pred_check
      %p2247 = pneg %p2246
    $region54: #{review_encoder_forward.1} parent=5 // pred_check_branch
      %2249 = sbr.rel (%p2247) target = $region56
    $region55: #{review_encoder_forward.1} parent=5 // pred_region
      %s2250 = ssub.s32 %s13, 2
      // Predicated region
      $region57: #{review_encoder_forward.1} parent=55 // pred_check
        %p2251 = pneg %p199
      $region58: #{review_encoder_forward.1} parent=55 // pred_check_branch
        %2253 = sbr.rel (%p2251) target = $region60
      $region59: #{review_encoder_forward.1} parent=55 // pred_region
        %s2254 = smul.u32 2, %s19
        %p2255 = scmp.lt.s32.totalorder %s2254, 3
        %s2256 = scalar_select %p2255, %s2254, 3
        %s2257 = smul.addr %s2256, 8
        %s2258 = scalar_lea.vmem %s7, %s2257
      $region60: #{review_encoder_forward.1} parent=55 // pred_fallthru
        _
    $region56: #{review_encoder_forward.1} parent=5 // pred_fallthru
      _
  $region6: #{review_encoder_forward.1} parent=0 // loop_footer
    %s17 = sadd.s32 1, %s13
  $region7: #{review_encoder_forward.1} parent=0 // loop_footer_branch
    %12 = sbr.rel target = $region3
  $region8: #{review_encoder_forward.1} parent=0 // loop_exit
    _

</llo_original>
